<compile_context>
chip_gen: v6e
topology: v6e:2x2x1
jax: 0.10.0
libtpu: 0.0.40
codegen_flags: <defaults>
</compile_context>

<pallas_src>
import functools

import jax
import jax.numpy as jnp
from jax.experimental import pallas as pl
from jax.experimental.pallas import tpu as pltpu

BN_EPS = 1e-5
NEG_BIG = -1e30  # padded-logit bias: exp(NEG_BIG - max) underflows to exactly 0
SUBLANE = 8
LANE = 128


def classif_relu_kernel(x_ref, gamma_ref, beta_ref, expand_ref, group_ref,
                        w_ref, b_ref, o_ref, *, inv_count):
    # x_ref:      (Np, F)  flattened NCHW activations, F = C*H*W, rows >= N zero
    # gamma_ref:  (1, C)   BatchNorm weight
    # beta_ref:   (1, C)   BatchNorm bias
    # expand_ref: (C, F)   channel indicator rows  (per-channel -> per-feature)
    # group_ref:  (F, C)   its transpose           (per-feature -> per-channel)
    # w_ref:      (F, Kp)  fc1 weight^T, zero-padded to Kp lanes
    # b_ref:      (1, Kp)  fc1 bias, padded with NEG_BIG
    # o_ref:      (Np, Kp) softmax output (padded columns are exactly 0)
    # inv_count:  static python float, 1 / (N_real * H * W)

    # --- ReLU --- (padded rows are 0 and stay 0, so they don't affect stats)
    x = jnp.maximum(x_ref[...], 0.0)

    # --- BatchNorm2d, training-mode batch stats, one pass (sum & sum^2) ---
    s1_f = jnp.sum(x, axis=0, keepdims=True)                   # (1, F)
    s2_f = jnp.sum(x * x, axis=0, keepdims=True)               # (1, F)
    s1_c = jnp.dot(s1_f, group_ref[...],
                   preferred_element_type=jnp.float32)         # (1, C)
    s2_c = jnp.dot(s2_f, group_ref[...],
                   preferred_element_type=jnp.float32)         # (1, C)
    mean = s1_c * inv_count
    var = jnp.maximum(s2_c * inv_count - mean * mean, 0.0)     # biased variance
    inv_std = jax.lax.rsqrt(var + BN_EPS)
    scale_c = inv_std * gamma_ref[...]                          # (1, C)
    shift_c = beta_ref[...] - mean * scale_c                    # (1, C)

    # Expand per-channel affine to per-feature (tiny MXU dots, no reshapes).
    scale_f = jnp.dot(scale_c, expand_ref[...],
                      preferred_element_type=jnp.float32)       # (1, F)
    shift_f = jnp.dot(shift_c, expand_ref[...],
                      preferred_element_type=jnp.float32)       # (1, F)
    y = x * scale_f + shift_f                                   # (Np, F)

    # --- Linear: single K=F contraction on the MXU ---
    logits = jnp.dot(y, w_ref[...],
                     preferred_element_type=jnp.float32) + b_ref[...]  # (Np, Kp)

    # --- Softmax over (padded) categories; padded columns contribute exp()=0 ---
    m = jnp.max(logits, axis=1, keepdims=True)
    e = jnp.exp(logits - m)
    denom = jnp.sum(e, axis=1, keepdims=True)
    o_ref[...] = e * pl.reciprocal(denom, approx=False)


def prepare_params(fc_w, fc_b, gamma, beta, nb_dico, size_image, lane=LANE):
    """One-time parameter layout (call once per model, reuse across forwards)."""
    K, F = fc_w.shape
    C = nb_dico
    HW = size_image[0] * size_image[1]
    assert F == C * HW
    Kp = ((K + lane - 1) // lane) * lane  # pad categories to a full lane slab

    w = jnp.zeros((F, Kp), jnp.float32).at[:, :K].set(fc_w.T.astype(jnp.float32))
    b = jnp.full((1, Kp), NEG_BIG, jnp.float32).at[0, :K].set(
        fc_b.astype(jnp.float32))
    g = gamma.reshape(1, C).astype(jnp.float32)
    bt = beta.reshape(1, C).astype(jnp.float32)
    # expand[c, f] = 1 iff feature f belongs to channel c (PyTorch NCHW flatten order)
    expand = jnp.kron(jnp.eye(C, dtype=jnp.float32),
                      jnp.ones((1, HW), jnp.float32))           # (C, F)
    group = expand.T                                            # (F, C)
    return {"w": w, "b": b, "gamma": g, "beta": bt,
            "expand": expand, "group": group,
            "nb_categories": K, "hw": HW}


def classif_layer_relu(x_nchw, params):
    """x_nchw: (N, C, H, W). Returns softmax probabilities (N, nb_categories)."""
    N, C, H, W = x_nchw.shape
    F = C * H * W
    Kp = params["w"].shape[1]
    # NCHW contiguous -> (N, C*H*W) view; identical to PyTorch x.view(-1, C*H*W).
    x2 = x_nchw.reshape(N, F).astype(jnp.float32)

    # Pad batch to a multiple of 8 sublanes; padded rows are zeros and, being
    # killed by ReLU, contribute nothing to the batch statistics since the
    # statistics divisor below uses the true N.
    Np = ((N + SUBLANE - 1) // SUBLANE) * SUBLANE
    if Np != N:
        x2 = jnp.pad(x2, ((0, Np - N), (0, 0)))
    inv_count = 1.0 / float(N * params["hw"])  # 1 / (N*H*W), static

    vmem = pl.BlockSpec(memory_space=pltpu.MemorySpace.VMEM)
    # TODO(synk): for large batches, add a grid over N ("parallel") with a separate
    # batch-stats pass (per-tile stats would diverge from full-batch BatchNorm).
    out = pl.pallas_call(
        functools.partial(classif_relu_kernel, inv_count=inv_count),
        out_shape=jax.ShapeDtypeStruct((Np, Kp), jnp.float32),
        in_specs=[vmem] * 7,
        out_specs=vmem,
    )(x2, params["gamma"], params["beta"], params["expand"], params["group"],
      params["w"], params["b"])
    return out[:N, :params["nb_categories"]]


if __name__ == "__main__":
    # Module hyperparams: nb_dico=4, size_image=(16,16), nb_categories=10
    N, C, H, W, K = 2, 4, 16, 16, 10
    F_in = C * H * W

    key = jax.random.PRNGKey(0)
    kx, kw, kb = jax.random.split(key, 3)

    x = jax.random.normal(kx, (N, C, H, W), dtype=jnp.float32)

    # PyTorch Linear default init: U(-1/sqrt(F), 1/sqrt(F))
    bound = 1.0 / (F_in ** 0.5)
    fc_w = jax.random.uniform(kw, (K, F_in), minval=-bound, maxval=bound,
                              dtype=jnp.float32)
    fc_b = jax.random.uniform(kb, (K,), minval=-bound, maxval=bound,
                              dtype=jnp.float32)
    # BatchNorm2d affine params (PyTorch default init)
    gamma = jnp.ones((C,), jnp.float32)
    beta = jnp.zeros((C,), jnp.float32)

    params = prepare_params(fc_w, fc_b, gamma, beta, C, (H, W))
    out = jax.block_until_ready(classif_layer_relu(x, params))

    # Pure-JAX reference for sanity check
    xr = jnp.maximum(x, 0.0)
    mean = xr.mean(axis=(0, 2, 3), keepdims=True)
    var = ((xr - mean) ** 2).mean(axis=(0, 2, 3), keepdims=True)
    y = ((xr - mean) * jax.lax.rsqrt(var + BN_EPS)
         * gamma.reshape(1, C, 1, 1) + beta.reshape(1, C, 1, 1))
    logits = y.reshape(N, F_in) @ fc_w.T + fc_b
    ref = jax.nn.softmax(logits, axis=1)

    assert out.shape == (N, K)
    assert jnp.allclose(out, ref, atol=1e-5, rtol=1e-4)
    print("KERNEL_OK")
</pallas_src>

<mosaic_0001>
module attributes {stable_mosaic.version = 11 : i64} {
  func.func @classif_relu_kernel(%arg0: memref<8x1024xf32, #tpu.memory_space<vmem>>, %arg1: memref<1x4xf32, #tpu.memory_space<vmem>>, %arg2: memref<1x4xf32, #tpu.memory_space<vmem>>, %arg3: memref<4x1024xf32, #tpu.memory_space<vmem>>, %arg4: memref<1024x4xf32, #tpu.memory_space<vmem>>, %arg5: memref<1024x128xf32, #tpu.memory_space<vmem>>, %arg6: memref<1x128xf32, #tpu.memory_space<vmem>>, %arg7: memref<8x128xf32, #tpu.memory_space<vmem>>) attributes {dimension_semantics = [], scalar_prefetch = 0 : i64, scratch_operands = 0 : i64, tpu.core_type = #tpu.core_type<tc>} {
    %c0 = arith.constant 0 : index
    %c0_0 = arith.constant 0 : index
    %0 = vector.load %arg0[%c0, %c0_0] : memref<8x1024xf32, #tpu.memory_space<vmem>>, vector<8x1024xf32>
    %cst = arith.constant 0.000000e+00 : f32
    %1 = vector.broadcast %cst : f32 to vector<8x1024xf32>
    %2 = arith.maximumf %0, %1 : vector<8x1024xf32>
    %cst_1 = arith.constant dense<0.000000e+00> : vector<1024xf32>
    %3 = vector.multi_reduction <add>, %2, %cst_1 [0] : vector<8x1024xf32> to vector<1024xf32>
    %4 = vector.shape_cast %3 : vector<1024xf32> to vector<1x1024xf32>
    %5 = arith.mulf %2, %2 : vector<8x1024xf32>
    %cst_2 = arith.constant dense<0.000000e+00> : vector<1024xf32>
    %6 = vector.multi_reduction <add>, %5, %cst_2 [0] : vector<8x1024xf32> to vector<1024xf32>
    %7 = vector.shape_cast %6 : vector<1024xf32> to vector<1x1024xf32>
    %c0_3 = arith.constant 0 : index
    %c0_4 = arith.constant 0 : index
    %8 = vector.load %arg4[%c0_3, %c0_4] : memref<1024x4xf32, #tpu.memory_space<vmem>>, vector<1024x4xf32>
    %cst_5 = arith.constant dense<0.000000e+00> : vector<1x4xf32>
    %9 = tpu.matmul %4, %8, %cst_5 {dimension_numbers = #tpu.dot_dimension_numbers<[1], [0], [0], [1], [0, 0, 1, 1], [], []>} : vector<1x1024xf32>, vector<1024x4xf32>, vector<1x4xf32> -> vector<1x4xf32>
    %c0_6 = arith.constant 0 : index
    %c0_7 = arith.constant 0 : index
    %10 = vector.load %arg4[%c0_6, %c0_7] : memref<1024x4xf32, #tpu.memory_space<vmem>>, vector<1024x4xf32>
    %cst_8 = arith.constant dense<0.000000e+00> : vector<1x4xf32>
    %11 = tpu.matmul %7, %10, %cst_8 {dimension_numbers = #tpu.dot_dimension_numbers<[1], [0], [0], [1], [0, 0, 1, 1], [], []>} : vector<1x1024xf32>, vector<1024x4xf32>, vector<1x4xf32> -> vector<1x4xf32>
    %cst_9 = arith.constant 0.001953125 : f32
    %12 = vector.broadcast %cst_9 : f32 to vector<1x4xf32>
    %13 = arith.mulf %9, %12 : vector<1x4xf32>
    %cst_10 = arith.constant 0.001953125 : f32
    %14 = vector.broadcast %cst_10 : f32 to vector<1x4xf32>
    %15 = arith.mulf %11, %14 : vector<1x4xf32>
    %16 = arith.mulf %13, %13 : vector<1x4xf32>
    %17 = arith.subf %15, %16 : vector<1x4xf32>
    %cst_11 = arith.constant 0.000000e+00 : f32
    %18 = vector.broadcast %cst_11 : f32 to vector<1x4xf32>
    %19 = arith.maximumf %17, %18 : vector<1x4xf32>
    %cst_12 = arith.constant 9.99999974E-6 : f32
    %20 = vector.broadcast %cst_12 : f32 to vector<1x4xf32>
    %21 = arith.addf %19, %20 : vector<1x4xf32>
    %22 = math.rsqrt %21 : vector<1x4xf32>
    %c0_13 = arith.constant 0 : index
    %c0_14 = arith.constant 0 : index
    %23 = vector.load %arg1[%c0_13, %c0_14] : memref<1x4xf32, #tpu.memory_space<vmem>>, vector<1x4xf32>
    %24 = arith.mulf %22, %23 : vector<1x4xf32>
    %c0_15 = arith.constant 0 : index
    %c0_16 = arith.constant 0 : index
    %25 = vector.load %arg2[%c0_15, %c0_16] : memref<1x4xf32, #tpu.memory_space<vmem>>, vector<1x4xf32>
    %26 = arith.mulf %13, %24 : vector<1x4xf32>
    %27 = arith.subf %25, %26 : vector<1x4xf32>
    %c0_17 = arith.constant 0 : index
    %c0_18 = arith.constant 0 : index
    %28 = vector.load %arg3[%c0_17, %c0_18] : memref<4x1024xf32, #tpu.memory_space<vmem>>, vector<4x1024xf32>
    %cst_19 = arith.constant dense<0.000000e+00> : vector<1x1024xf32>
    %29 = tpu.matmul %24, %28, %cst_19 {dimension_numbers = #tpu.dot_dimension_numbers<[1], [0], [0], [1], [0, 0, 1, 1], [], []>} : vector<1x4xf32>, vector<4x1024xf32>, vector<1x1024xf32> -> vector<1x1024xf32>
    %c0_20 = arith.constant 0 : index
    %c0_21 = arith.constant 0 : index
    %30 = vector.load %arg3[%c0_20, %c0_21] : memref<4x1024xf32, #tpu.memory_space<vmem>>, vector<4x1024xf32>
    %cst_22 = arith.constant dense<0.000000e+00> : vector<1x1024xf32>
    %31 = tpu.matmul %27, %30, %cst_22 {dimension_numbers = #tpu.dot_dimension_numbers<[1], [0], [0], [1], [0, 0, 1, 1], [], []>} : vector<1x4xf32>, vector<4x1024xf32>, vector<1x1024xf32> -> vector<1x1024xf32>
    %32 = vector.broadcast %29 : vector<1x1024xf32> to vector<8x1024xf32>
    %33 = arith.mulf %2, %32 : vector<8x1024xf32>
    %34 = vector.broadcast %31 : vector<1x1024xf32> to vector<8x1024xf32>
    %35 = arith.addf %33, %34 : vector<8x1024xf32>
    %c0_23 = arith.constant 0 : index
    %c0_24 = arith.constant 0 : index
    %36 = vector.load %arg5[%c0_23, %c0_24] : memref<1024x128xf32, #tpu.memory_space<vmem>>, vector<1024x128xf32>
    %cst_25 = arith.constant dense<0.000000e+00> : vector<8x128xf32>
    %37 = tpu.matmul %35, %36, %cst_25 {dimension_numbers = #tpu.dot_dimension_numbers<[1], [0], [0], [1], [0, 0, 1, 1], [], []>} : vector<8x1024xf32>, vector<1024x128xf32>, vector<8x128xf32> -> vector<8x128xf32>
    %c0_26 = arith.constant 0 : index
    %c0_27 = arith.constant 0 : index
    %38 = vector.load %arg6[%c0_26, %c0_27] : memref<1x128xf32, #tpu.memory_space<vmem>>, vector<1x128xf32>
    %39 = vector.broadcast %38 : vector<1x128xf32> to vector<8x128xf32>
    %40 = arith.addf %37, %39 : vector<8x128xf32>
    %cst_28 = arith.constant dense<0xFF800000> : vector<8xf32>
    %41 = vector.multi_reduction <maximumf>, %40, %cst_28 [1] : vector<8x128xf32> to vector<8xf32>
    %42 = vector.shape_cast %41 : vector<8xf32> to vector<8x1xf32>
    %43 = vector.broadcast %42 : vector<8x1xf32> to vector<8x128xf32>
    %44 = arith.subf %40, %43 : vector<8x128xf32>
    %45 = math.exp %44 : vector<8x128xf32>
    %cst_29 = arith.constant dense<0.000000e+00> : vector<8xf32>
    %46 = vector.multi_reduction <add>, %45, %cst_29 [1] : vector<8x128xf32> to vector<8xf32>
    %47 = vector.shape_cast %46 : vector<8xf32> to vector<8x1xf32>
    %48 = tpu.reciprocal %47 : vector<8x1xf32> -> vector<8x1xf32>
    %49 = vector.broadcast %48 : vector<8x1xf32> to vector<8x128xf32>
    %50 = arith.mulf %45, %49 : vector<8x128xf32>
    %c0_30 = arith.constant 0 : index
    %c0_31 = arith.constant 0 : index
    %51 = vector.load %arg7[%c0_30, %c0_31] : memref<8x128xf32, #tpu.memory_space<vmem>>, vector<8x128xf32>
    tpu.vector_store %arg7[%c0_30, %c0_31], %50 {strides = array<i32>} : memref<8x128xf32, #tpu.memory_space<vmem>>, vector<8x128xf32>,
    return
  }
}

</mosaic_0001>

<llo_original>
// kernel: tpu_custom_call.1
$region0: #{tpu_custom_call.1}
  #allocation0 [shape = 'u32[]', space=smem, size = 0x4, offset = 0x4, fixed_abs, tag = 'smem constant byte address 0x4 - core index']
  #allocation1 [shape = 'u32[144,128]{1,0:T(1,128)}', space=vmem, size = 0x12000, scoped, tag = 'internal scratch']
  %s0 = inlined_call_operand.hbm [shape: f32[8,1024], index: 0, kind: input, shape index: {}]
  %s1 = inlined_call_operand.vmem [shape: f32[1,4], index: 1, kind: input, shape index: {}]
  %s2 = inlined_call_operand.vmem [shape: f32[1,4], index: 2, kind: input, shape index: {}]
  %s3 = inlined_call_operand.vmem [shape: f32[4,1024], index: 3, kind: input, shape index: {}]
  %s4 = inlined_call_operand.vmem [shape: f32[1024,4], index: 4, kind: input, shape index: {}]
  %s5 = inlined_call_operand.vmem [shape: f32[1024,128], index: 5, kind: input, shape index: {}]
  %s6 = inlined_call_operand.vmem [shape: f32[1,128], index: 6, kind: input, shape index: {}]
  %s7 = inlined_call_operand.hbm [shape: f32[8,128], index: 7, kind: output, shape index: {}]
  %s8 = sld [smem:[#allocation0]]
  $region42: #{tpu_custom_call.1} parent=0
    _
  %s10 = ssub.s32 1, %s8
  %s11 = scalar_select 0, %s10, %s8
  $region1: #{tpu_custom_call.1} parent=0
    #allocation2 [shape = 'u8[32768]{0}', space=vmem, size = 0x8000, scoped, tag = 'input window, operand 0, single buffered']
    #allocation3 [shape = 's32[1]{0}', space=sflag, size = 0x4, scoped, tag = 'scoped memory for tpu_custom_call.1']
    #allocation4 [shape = 's32[1]{0}', space=sflag, size = 0x4, scoped, tag = 'scoped memory for tpu_custom_call.1']
    #allocation5 [shape = 'u8[4096]{0}', space=vmem, size = 0x1000, scoped, tag = 'output window, operand 0, single buffered']
    %12 = vsyncpa [#allocation3], 0
    %13 = vsyncpa [#allocation4], 0
    // Predicated region
    $region2: #{tpu_custom_call.1} parent=1 // pred_check
      _
    $region3: #{tpu_custom_call.1} parent=1 // pred_check_branch
      %15 = sbr.rel (0) target = $region5
    $region4: #{tpu_custom_call.1} parent=1 // pred_region
      %s17 = ssub.s32 1024, 1024
      %18 = vsyncadd [#allocation3], %s17
      %s20 = sshll.u32 [#allocation2], 4
      %s21 = int_to_ptr.vmem [resolvable:$true] %s20
      %23 = dma.hbm_to_vmem [thread:$0]  %s0, 1024, %s21, [#allocation3]
    $region5: #{tpu_custom_call.1} parent=1 // pred_fallthru
      _
    // Predicated region
    $region6: #{tpu_custom_call.1} parent=1 // pred_check
      _
    $region7: #{tpu_custom_call.1} parent=1 // pred_check_branch
      %25 = sbr.rel (0) target = $region9
    $region8: #{tpu_custom_call.1} parent=1 // pred_region
      _
    $region9: #{tpu_custom_call.1} parent=1 // pred_fallthru
      _
    // Predicated region
    $region10: #{tpu_custom_call.1} parent=1 // pred_check
      _
    $region11: #{tpu_custom_call.1} parent=1 // pred_check_branch
      %27 = sbr.rel (0) target = $region13
    $region12: #{tpu_custom_call.1} parent=1 // pred_region
      _
    $region13: #{tpu_custom_call.1} parent=1 // pred_fallthru
      _
    // Predicated region
    $region14: #{tpu_custom_call.1} parent=1 // pred_check
      _
    $region15: #{tpu_custom_call.1} parent=1 // pred_check_branch
      %29 = sbr.rel (0) target = $region17
    $region16: #{tpu_custom_call.1} parent=1 // pred_region
      _
    $region17: #{tpu_custom_call.1} parent=1 // pred_fallthru
      _
    // Predicated region
    $region18: #{tpu_custom_call.1} parent=1 // pred_check
      _
    $region19: #{tpu_custom_call.1} parent=1 // pred_check_branch
      %31 = sbr.rel (0) target = $region21
    $region20: #{tpu_custom_call.1} parent=1 // pred_region
      _
    $region21: #{tpu_custom_call.1} parent=1 // pred_fallthru
      _
    // Predicated region
    $region22: #{tpu_custom_call.1} parent=1 // pred_check
      _
    $region23: #{tpu_custom_call.1} parent=1 // pred_check_branch
      %33 = sbr.rel (0) target = $region25
    $region24: #{tpu_custom_call.1} parent=1 // pred_region
      _
    $region25: #{tpu_custom_call.1} parent=1 // pred_fallthru
      _
    // Predicated region
    $region26: #{tpu_custom_call.1} parent=1 // pred_check
      _
    $region27: #{tpu_custom_call.1} parent=1 // pred_check_branch
      %35 = sbr.rel (0) target = $region29
    $region28: #{tpu_custom_call.1} parent=1 // pred_region
      _
    $region29: #{tpu_custom_call.1} parent=1 // pred_fallthru
      _
    // Predicated region
    $region30: #{tpu_custom_call.1} parent=1 // pred_check
      _
    $region31: #{tpu_custom_call.1} parent=1 // pred_check_branch
      %37 = sbr.rel (0) target = $region33
    $region32: #{tpu_custom_call.1} parent=1 // pred_region
      %38 = dma.done [#allocation3], 1024
    $region33: #{tpu_custom_call.1} parent=1 // pred_fallthru
      _
    %v39 = vld [vmem:[#allocation2] sm:$0xff]
    %v40 = vld [vmem:[#allocation2 + $0x8] sm:$0xff]
    %v41 = vld [vmem:[#allocation2 + $0x10] sm:$0xff]
    %v42 = vld [vmem:[#allocation2 + $0x18] sm:$0xff]
    %v43 = vld [vmem:[#allocation2 + $0x20] sm:$0xff]
    %v44 = vld [vmem:[#allocation2 + $0x28] sm:$0xff]
    %v45 = vld [vmem:[#allocation2 + $0x30] sm:$0xff]
    %v46 = vld [vmem:[#allocation2 + $0x38] sm:$0xff]
    %v47 = vmax.f32 %v39, 0.0
    %v48 = vmax.f32 %v40, 0.0
    %v49 = vmax.f32 %v41, 0.0
    %v50 = vmax.f32 %v42, 0.0
    %v51 = vmax.f32 %v43, 0.0
    %v52 = vmax.f32 %v44, 0.0
    %v53 = vmax.f32 %v45, 0.0
    %v54 = vmax.f32 %v46, 0.0
    %v55 = vrot.slane %v47, 4
    %v56 = vadd.f32 %v47, %v55
    %v57 = vrot.slane %v56, 2
    %v58 = vadd.f32 %v56, %v57
    %v59 = vrot.slane %v58, 1
    %v60 = vadd.f32 %v58, %v59
    %v61 = vrot.slane %v48, 4
    %v62 = vadd.f32 %v48, %v61
    %v63 = vrot.slane %v62, 2
    %v64 = vadd.f32 %v62, %v63
    %v65 = vrot.slane %v64, 1
    %v66 = vadd.f32 %v64, %v65
    %v67 = vrot.slane %v49, 4
    %v68 = vadd.f32 %v49, %v67
    %v69 = vrot.slane %v68, 2
    %v70 = vadd.f32 %v68, %v69
    %v71 = vrot.slane %v70, 1
    %v72 = vadd.f32 %v70, %v71
    %v73 = vrot.slane %v50, 4
    %v74 = vadd.f32 %v50, %v73
    %v75 = vrot.slane %v74, 2
    %v76 = vadd.f32 %v74, %v75
    %v77 = vrot.slane %v76, 1
    %v78 = vadd.f32 %v76, %v77
    %v79 = vrot.slane %v51, 4
    %v80 = vadd.f32 %v51, %v79
    %v81 = vrot.slane %v80, 2
    %v82 = vadd.f32 %v80, %v81
    %v83 = vrot.slane %v82, 1
    %v84 = vadd.f32 %v82, %v83
    %v85 = vrot.slane %v52, 4
    %v86 = vadd.f32 %v52, %v85
    %v87 = vrot.slane %v86, 2
    %v88 = vadd.f32 %v86, %v87
    %v89 = vrot.slane %v88, 1
    %v90 = vadd.f32 %v88, %v89
    %v91 = vrot.slane %v53, 4
    %v92 = vadd.f32 %v53, %v91
    %v93 = vrot.slane %v92, 2
    %v94 = vadd.f32 %v92, %v93
    %v95 = vrot.slane %v94, 1
    %v96 = vadd.f32 %v94, %v95
    %v97 = vrot.slane %v54, 4
    %v98 = vadd.f32 %v54, %v97
    %v99 = vrot.slane %v98, 2
    %v100 = vadd.f32 %v98, %v99
    %v101 = vrot.slane %v100, 1
    %v102 = vadd.f32 %v100, %v101
    %v103 = vmul.f32 %v47, %v47
    %v104 = vmul.f32 %v48, %v48
    %v105 = vmul.f32 %v49, %v49
    %v106 = vmul.f32 %v50, %v50
    %v107 = vmul.f32 %v51, %v51
    %v108 = vmul.f32 %v52, %v52
    %v109 = vmul.f32 %v53, %v53
    %v110 = vmul.f32 %v54, %v54
    %v111 = vrot.slane %v103, 4
    %v112 = vadd.f32 %v103, %v111
    %v113 = vrot.slane %v112, 2
    %v114 = vadd.f32 %v112, %v113
    %v115 = vrot.slane %v114, 1
    %v116 = vadd.f32 %v114, %v115
    %v117 = vrot.slane %v104, 4
    %v118 = vadd.f32 %v104, %v117
    %v119 = vrot.slane %v118, 2
    %v120 = vadd.f32 %v118, %v119
    %v121 = vrot.slane %v120, 1
    %v122 = vadd.f32 %v120, %v121
    %v123 = vrot.slane %v105, 4
    %v124 = vadd.f32 %v105, %v123
    %v125 = vrot.slane %v124, 2
    %v126 = vadd.f32 %v124, %v125
    %v127 = vrot.slane %v126, 1
    %v128 = vadd.f32 %v126, %v127
    %v129 = vrot.slane %v106, 4
    %v130 = vadd.f32 %v106, %v129
    %v131 = vrot.slane %v130, 2
    %v132 = vadd.f32 %v130, %v131
    %v133 = vrot.slane %v132, 1
    %v134 = vadd.f32 %v132, %v133
    %v135 = vrot.slane %v107, 4
    %v136 = vadd.f32 %v107, %v135
    %v137 = vrot.slane %v136, 2
    %v138 = vadd.f32 %v136, %v137
    %v139 = vrot.slane %v138, 1
    %v140 = vadd.f32 %v138, %v139
    %v141 = vrot.slane %v108, 4
    %v142 = vadd.f32 %v108, %v141
    %v143 = vrot.slane %v142, 2
    %v144 = vadd.f32 %v142, %v143
    %v145 = vrot.slane %v144, 1
    %v146 = vadd.f32 %v144, %v145
    %v147 = vrot.slane %v109, 4
    %v148 = vadd.f32 %v109, %v147
    %v149 = vrot.slane %v148, 2
    %v150 = vadd.f32 %v148, %v149
    %v151 = vrot.slane %v150, 1
    %v152 = vadd.f32 %v150, %v151
    %v153 = vrot.slane %v110, 4
    %v154 = vadd.f32 %v110, %v153
    %v155 = vrot.slane %v154, 2
    %v156 = vadd.f32 %v154, %v155
    %v157 = vrot.slane %v156, 1
    %v158 = vadd.f32 %v156, %v157
    %v159 = vld [vmem:[%s4] sm:$0xff]
    %v160 = vld [vmem:[%s4 + $0x8] sm:$0xff]
    %v161 = vld [vmem:[%s4 + $0x10] sm:$0xff]
    %v162 = vld [vmem:[%s4 + $0x18] sm:$0xff]
    %v163 = vld [vmem:[%s4 + $0x20] sm:$0xff]
    %v164 = vld [vmem:[%s4 + $0x28] sm:$0xff]
    %v165 = vld [vmem:[%s4 + $0x30] sm:$0xff]
    %v166 = vld [vmem:[%s4 + $0x38] sm:$0xff]
    %v167 = vld [vmem:[%s4 + $0x40] sm:$0xff]
    %v168 = vld [vmem:[%s4 + $0x48] sm:$0xff]
    %v169 = vld [vmem:[%s4 + $0x50] sm:$0xff]
    %v170 = vld [vmem:[%s4 + $0x58] sm:$0xff]
    %v171 = vld [vmem:[%s4 + $0x60] sm:$0xff]
    %v172 = vld [vmem:[%s4 + $0x68] sm:$0xff]
    %v173 = vld [vmem:[%s4 + $0x70] sm:$0xff]
    %v174 = vld [vmem:[%s4 + $0x78] sm:$0xff]
    %v175 = vld [vmem:[%s4 + $0x80] sm:$0xff]
    %v176 = vld [vmem:[%s4 + $0x88] sm:$0xff]
    %v177 = vld [vmem:[%s4 + $0x90] sm:$0xff]
    %v178 = vld [vmem:[%s4 + $0x98] sm:$0xff]
    %v179 = vld [vmem:[%s4 + $0xa0] sm:$0xff]
    %v180 = vld [vmem:[%s4 + $0xa8] sm:$0xff]
    %v181 = vld [vmem:[%s4 + $0xb0] sm:$0xff]
    %v182 = vld [vmem:[%s4 + $0xb8] sm:$0xff]
    %v183 = vld [vmem:[%s4 + $0xc0] sm:$0xff]
    %v184 = vld [vmem:[%s4 + $0xc8] sm:$0xff]
    %v185 = vld [vmem:[%s4 + $0xd0] sm:$0xff]
    %v186 = vld [vmem:[%s4 + $0xd8] sm:$0xff]
    %v187 = vld [vmem:[%s4 + $0xe0] sm:$0xff]
    %v188 = vld [vmem:[%s4 + $0xe8] sm:$0xff]
    %v189 = vld [vmem:[%s4 + $0xf0] sm:$0xff]
    %v190 = vld [vmem:[%s4 + $0xf8] sm:$0xff]
    %v191 = vld [vmem:[%s4 + $0x100] sm:$0xff]
    %v192 = vld [vmem:[%s4 + $0x108] sm:$0xff]
    %v193 = vld [vmem:[%s4 + $0x110] sm:$0xff]
    %v194 = vld [vmem:[%s4 + $0x118] sm:$0xff]
    %v195 = vld [vmem:[%s4 + $0x120] sm:$0xff]
    %v196 = vld [vmem:[%s4 + $0x128] sm:$0xff]
    %v197 = vld [vmem:[%s4 + $0x130] sm:$0xff]
    %v198 = vld [vmem:[%s4 + $0x138] sm:$0xff]
    %v199 = vld [vmem:[%s4 + $0x140] sm:$0xff]
    %v200 = vld [vmem:[%s4 + $0x148] sm:$0xff]
    %v201 = vld [vmem:[%s4 + $0x150] sm:$0xff]
    %v202 = vld [vmem:[%s4 + $0x158] sm:$0xff]
    %v203 = vld [vmem:[%s4 + $0x160] sm:$0xff]
    %v204 = vld [vmem:[%s4 + $0x168] sm:$0xff]
    %v205 = vld [vmem:[%s4 + $0x170] sm:$0xff]
    %v206 = vld [vmem:[%s4 + $0x178] sm:$0xff]
    %v207 = vld [vmem:[%s4 + $0x180] sm:$0xff]
    %v208 = vld [vmem:[%s4 + $0x188] sm:$0xff]
    %v209 = vld [vmem:[%s4 + $0x190] sm:$0xff]
    %v210 = vld [vmem:[%s4 + $0x198] sm:$0xff]
    %v211 = vld [vmem:[%s4 + $0x1a0] sm:$0xff]
    %v212 = vld [vmem:[%s4 + $0x1a8] sm:$0xff]
    %v213 = vld [vmem:[%s4 + $0x1b0] sm:$0xff]
    %v214 = vld [vmem:[%s4 + $0x1b8] sm:$0xff]
    %v215 = vld [vmem:[%s4 + $0x1c0] sm:$0xff]
    %v216 = vld [vmem:[%s4 + $0x1c8] sm:$0xff]
    %v217 = vld [vmem:[%s4 + $0x1d0] sm:$0xff]
    %v218 = vld [vmem:[%s4 + $0x1d8] sm:$0xff]
    %v219 = vld [vmem:[%s4 + $0x1e0] sm:$0xff]
    %v220 = vld [vmem:[%s4 + $0x1e8] sm:$0xff]
    %v221 = vld [vmem:[%s4 + $0x1f0] sm:$0xff]
    %v222 = vld [vmem:[%s4 + $0x1f8] sm:$0xff]
    %v223 = vld [vmem:[%s4 + $0x200] sm:$0xff]
    %v224 = vld [vmem:[%s4 + $0x208] sm:$0xff]
    %v225 = vld [vmem:[%s4 + $0x210] sm:$0xff]
    %v226 = vld [vmem:[%s4 + $0x218] sm:$0xff]
    %v227 = vld [vmem:[%s4 + $0x220] sm:$0xff]
    %v228 = vld [vmem:[%s4 + $0x228] sm:$0xff]
    %v229 = vld [vmem:[%s4 + $0x230] sm:$0xff]
    %v230 = vld [vmem:[%s4 + $0x238] sm:$0xff]
    %v231 = vld [vmem:[%s4 + $0x240] sm:$0xff]
    %v232 = vld [vmem:[%s4 + $0x248] sm:$0xff]
    %v233 = vld [vmem:[%s4 + $0x250] sm:$0xff]
    %v234 = vld [vmem:[%s4 + $0x258] sm:$0xff]
    %v235 = vld [vmem:[%s4 + $0x260] sm:$0xff]
    %v236 = vld [vmem:[%s4 + $0x268] sm:$0xff]
    %v237 = vld [vmem:[%s4 + $0x270] sm:$0xff]
    %v238 = vld [vmem:[%s4 + $0x278] sm:$0xff]
    %v239 = vld [vmem:[%s4 + $0x280] sm:$0xff]
    %v240 = vld [vmem:[%s4 + $0x288] sm:$0xff]
    %v241 = vld [vmem:[%s4 + $0x290] sm:$0xff]
    %v242 = vld [vmem:[%s4 + $0x298] sm:$0xff]
    %v243 = vld [vmem:[%s4 + $0x2a0] sm:$0xff]
    %v244 = vld [vmem:[%s4 + $0x2a8] sm:$0xff]
    %v245 = vld [vmem:[%s4 + $0x2b0] sm:$0xff]
    %v246 = vld [vmem:[%s4 + $0x2b8] sm:$0xff]
    %v247 = vld [vmem:[%s4 + $0x2c0] sm:$0xff]
    %v248 = vld [vmem:[%s4 + $0x2c8] sm:$0xff]
    %v249 = vld [vmem:[%s4 + $0x2d0] sm:$0xff]
    %v250 = vld [vmem:[%s4 + $0x2d8] sm:$0xff]
    %v251 = vld [vmem:[%s4 + $0x2e0] sm:$0xff]
    %v252 = vld [vmem:[%s4 + $0x2e8] sm:$0xff]
    %v253 = vld [vmem:[%s4 + $0x2f0] sm:$0xff]
    %v254 = vld [vmem:[%s4 + $0x2f8] sm:$0xff]
    %v255 = vld [vmem:[%s4 + $0x300] sm:$0xff]
    %v256 = vld [vmem:[%s4 + $0x308] sm:$0xff]
    %v257 = vld [vmem:[%s4 + $0x310] sm:$0xff]
    %v258 = vld [vmem:[%s4 + $0x318] sm:$0xff]
    %v259 = vld [vmem:[%s4 + $0x320] sm:$0xff]
    %v260 = vld [vmem:[%s4 + $0x328] sm:$0xff]
    %v261 = vld [vmem:[%s4 + $0x330] sm:$0xff]
    %v262 = vld [vmem:[%s4 + $0x338] sm:$0xff]
    %v263 = vld [vmem:[%s4 + $0x340] sm:$0xff]
    %v264 = vld [vmem:[%s4 + $0x348] sm:$0xff]
    %v265 = vld [vmem:[%s4 + $0x350] sm:$0xff]
    %v266 = vld [vmem:[%s4 + $0x358] sm:$0xff]
    %v267 = vld [vmem:[%s4 + $0x360] sm:$0xff]
    %v268 = vld [vmem:[%s4 + $0x368] sm:$0xff]
    %v269 = vld [vmem:[%s4 + $0x370] sm:$0xff]
    %v270 = vld [vmem:[%s4 + $0x378] sm:$0xff]
    %v271 = vld [vmem:[%s4 + $0x380] sm:$0xff]
    %v272 = vld [vmem:[%s4 + $0x388] sm:$0xff]
    %v273 = vld [vmem:[%s4 + $0x390] sm:$0xff]
    %v274 = vld [vmem:[%s4 + $0x398] sm:$0xff]
    %v275 = vld [vmem:[%s4 + $0x3a0] sm:$0xff]
    %v276 = vld [vmem:[%s4 + $0x3a8] sm:$0xff]
    %v277 = vld [vmem:[%s4 + $0x3b0] sm:$0xff]
    %v278 = vld [vmem:[%s4 + $0x3b8] sm:$0xff]
    %v279 = vld [vmem:[%s4 + $0x3c0] sm:$0xff]
    %v280 = vld [vmem:[%s4 + $0x3c8] sm:$0xff]
    %v281 = vld [vmem:[%s4 + $0x3d0] sm:$0xff]
    %v282 = vld [vmem:[%s4 + $0x3d8] sm:$0xff]
    %v283 = vld [vmem:[%s4 + $0x3e0] sm:$0xff]
    %v284 = vld [vmem:[%s4 + $0x3e8] sm:$0xff]
    %v285 = vld [vmem:[%s4 + $0x3f0] sm:$0xff]
    %v286 = vld [vmem:[%s4 + $0x3f8] sm:$0xff]
    %287 = vmatprep.subr.mxu0 0.0
    %288 = vmatpush1.msra.mxu0 %v174
    %289 = vmatprep.subr.mxu0 0.0
    %290 = vmatpush1.msra.mxu0 %v173
    %291 = vmatprep.subr.mxu0 0.0
    %292 = vmatpush1.msra.mxu0 %v172
    %293 = vmatprep.subr.mxu0 0.0
    %294 = vmatpush1.msra.mxu0 %v171
    %295 = vmatprep.subr.mxu0 0.0
    %296 = vmatpush1.msra.mxu0 %v170
    %297 = vmatprep.subr.mxu0 0.0
    %298 = vmatpush1.msra.mxu0 %v169
    %299 = vmatprep.subr.mxu0 0.0
    %300 = vmatpush1.msra.mxu0 %v168
    %301 = vmatprep.subr.mxu0 0.0
    %302 = vmatpush1.msra.mxu0 %v167
    %303 = vmatprep.subr.mxu0 0.0
    %304 = vmatpush1.msra.mxu0 %v166
    %305 = vmatprep.subr.mxu0 0.0
    %306 = vmatpush1.msra.mxu0 %v165
    %307 = vmatprep.subr.mxu0 0.0
    %308 = vmatpush1.msra.mxu0 %v164
    %309 = vmatprep.subr.mxu0 0.0
    %310 = vmatpush1.msra.mxu0 %v163
    %311 = vmatprep.subr.mxu0 0.0
    %312 = vmatpush1.msra.mxu0 %v162
    %313 = vmatprep.subr.mxu0 0.0
    %314 = vmatpush1.msra.mxu0 %v161
    %315 = vmatprep.subr.mxu0 0.0
    %316 = vmatpush1.msra.mxu0 %v160
    %317 = vmatprep.subr.mxu0 0.0
    %318 = vmatpush1.msra.mxu0 %v159
    %319 = vmatprep.subr.mxu0 0.0
    %320 = vmatpush2.msra.mxu0 %v190
    %321 = vmatprep.subr.mxu0 0.0
    %322 = vmatpush2.msra.mxu0 %v189
    %323 = vmatprep.subr.mxu0 0.0
    %324 = vmatpush2.msra.mxu0 %v188
    %325 = vmatprep.subr.mxu0 0.0
    %326 = vmatpush2.msra.mxu0 %v187
    %327 = vmatprep.subr.mxu0 0.0
    %328 = vmatpush2.msra.mxu0 %v186
    %329 = vmatprep.subr.mxu0 0.0
    %330 = vmatpush2.msra.mxu0 %v185
    %331 = vmatprep.subr.mxu0 0.0
    %332 = vmatpush2.msra.mxu0 %v184
    %333 = vmatprep.subr.mxu0 0.0
    %334 = vmatpush2.msra.mxu0 %v183
    %335 = vmatprep.subr.mxu0 0.0
    %336 = vmatpush2.msra.mxu0 %v182
    %337 = vmatprep.subr.mxu0 0.0
    %338 = vmatpush2.msra.mxu0 %v181
    %339 = vmatprep.subr.mxu0 0.0
    %340 = vmatpush2.msra.mxu0 %v180
    %341 = vmatprep.subr.mxu0 0.0
    %342 = vmatpush2.msra.mxu0 %v179
    %343 = vmatprep.subr.mxu0 0.0
    %344 = vmatpush2.msra.mxu0 %v178
    %345 = vmatprep.subr.mxu0 0.0
    %346 = vmatpush2.msra.mxu0 %v177
    %347 = vmatprep.subr.mxu0 0.0
    %348 = vmatpush2.msra.mxu0 %v176
    %349 = vmatprep.subr.mxu0 0.0
    %350 = vmatpush2.msra.mxu0 %v175
    %351 = vmatprep.mubr.f32.mxu0 %v66
    %352 = vmatmul.mubr.f32.gmra.mxu0 %v60
    %v353 = vpop.f32.mrf.mxu0
    %v354 = vadd.f32 0.0, %v353
    %v355 = vpop.f32.mrf.mxu0
    %356 = vdwg.mxu0
    %357 = vmatprep.subr.mxu0 0.0
    %358 = vmatpush1.msra.mxu0 %v206
    %359 = vmatprep.subr.mxu0 0.0
    %360 = vmatpush1.msra.mxu0 %v205
    %361 = vmatprep.subr.mxu0 0.0
    %362 = vmatpush1.msra.mxu0 %v204
    %363 = vmatprep.subr.mxu0 0.0
    %364 = vmatpush1.msra.mxu0 %v203
    %365 = vmatprep.subr.mxu0 0.0
    %366 = vmatpush1.msra.mxu0 %v202
    %367 = vmatprep.subr.mxu0 0.0
    %368 = vmatpush1.msra.mxu0 %v201
    %369 = vmatprep.subr.mxu0 0.0
    %370 = vmatpush1.msra.mxu0 %v200
    %371 = vmatprep.subr.mxu0 0.0
    %372 = vmatpush1.msra.mxu0 %v199
    %373 = vmatprep.subr.mxu0 0.0
    %374 = vmatpush1.msra.mxu0 %v198
    %375 = vmatprep.subr.mxu0 0.0
    %376 = vmatpush1.msra.mxu0 %v197
    %377 = vmatprep.subr.mxu0 0.0
    %378 = vmatpush1.msra.mxu0 %v196
    %379 = vmatprep.subr.mxu0 0.0
    %380 = vmatpush1.msra.mxu0 %v195
    %381 = vmatprep.subr.mxu0 0.0
    %382 = vmatpush1.msra.mxu0 %v194
    %383 = vmatprep.subr.mxu0 0.0
    %384 = vmatpush1.msra.mxu0 %v193
    %385 = vmatprep.subr.mxu0 0.0
    %386 = vmatpush1.msra.mxu0 %v192
    %387 = vmatprep.subr.mxu0 0.0
    %388 = vmatpush1.msra.mxu0 %v191
    %389 = vmatprep.subr.mxu0 0.0
    %390 = vmatpush2.msra.mxu0 %v222
    %391 = vmatprep.subr.mxu0 0.0
    %392 = vmatpush2.msra.mxu0 %v221
    %393 = vmatprep.subr.mxu0 0.0
    %394 = vmatpush2.msra.mxu0 %v220
    %395 = vmatprep.subr.mxu0 0.0
    %396 = vmatpush2.msra.mxu0 %v219
    %397 = vmatprep.subr.mxu0 0.0
    %398 = vmatpush2.msra.mxu0 %v218
    %399 = vmatprep.subr.mxu0 0.0
    %400 = vmatpush2.msra.mxu0 %v217
    %401 = vmatprep.subr.mxu0 0.0
    %402 = vmatpush2.msra.mxu0 %v216
    %403 = vmatprep.subr.mxu0 0.0
    %404 = vmatpush2.msra.mxu0 %v215
    %405 = vmatprep.subr.mxu0 0.0
    %406 = vmatpush2.msra.mxu0 %v214
    %407 = vmatprep.subr.mxu0 0.0
    %408 = vmatpush2.msra.mxu0 %v213
    %409 = vmatprep.subr.mxu0 0.0
    %410 = vmatpush2.msra.mxu0 %v212
    %411 = vmatprep.subr.mxu0 0.0
    %412 = vmatpush2.msra.mxu0 %v211
    %413 = vmatprep.subr.mxu0 0.0
    %414 = vmatpush2.msra.mxu0 %v210
    %415 = vmatprep.subr.mxu0 0.0
    %416 = vmatpush2.msra.mxu0 %v209
    %417 = vmatprep.subr.mxu0 0.0
    %418 = vmatpush2.msra.mxu0 %v208
    %419 = vmatprep.subr.mxu0 0.0
    %420 = vmatpush2.msra.mxu0 %v207
    %421 = vmatprep.mubr.f32.mxu0 %v78
    %422 = vmatmul.mubr.f32.gmra.mxu0 %v72
    %v423 = vpop.f32.mrf.mxu0
    %v424 = vadd.f32 %v354, %v423
    %v425 = vpop.f32.mrf.mxu0
    %426 = vdwg.mxu0
    %427 = vmatprep.subr.mxu0 0.0
    %428 = vmatpush1.msra.mxu0 %v238
    %429 = vmatprep.subr.mxu0 0.0
    %430 = vmatpush1.msra.mxu0 %v237
    %431 = vmatprep.subr.mxu0 0.0
    %432 = vmatpush1.msra.mxu0 %v236
    %433 = vmatprep.subr.mxu0 0.0
    %434 = vmatpush1.msra.mxu0 %v235
    %435 = vmatprep.subr.mxu0 0.0
    %436 = vmatpush1.msra.mxu0 %v234
    %437 = vmatprep.subr.mxu0 0.0
    %438 = vmatpush1.msra.mxu0 %v233
    %439 = vmatprep.subr.mxu0 0.0
    %440 = vmatpush1.msra.mxu0 %v232
    %441 = vmatprep.subr.mxu0 0.0
    %442 = vmatpush1.msra.mxu0 %v231
    %443 = vmatprep.subr.mxu0 0.0
    %444 = vmatpush1.msra.mxu0 %v230
    %445 = vmatprep.subr.mxu0 0.0
    %446 = vmatpush1.msra.mxu0 %v229
    %447 = vmatprep.subr.mxu0 0.0
    %448 = vmatpush1.msra.mxu0 %v228
    %449 = vmatprep.subr.mxu0 0.0
    %450 = vmatpush1.msra.mxu0 %v227
    %451 = vmatprep.subr.mxu0 0.0
    %452 = vmatpush1.msra.mxu0 %v226
    %453 = vmatprep.subr.mxu0 0.0
    %454 = vmatpush1.msra.mxu0 %v225
    %455 = vmatprep.subr.mxu0 0.0
    %456 = vmatpush1.msra.mxu0 %v224
    %457 = vmatprep.subr.mxu0 0.0
    %458 = vmatpush1.msra.mxu0 %v223
    %459 = vmatprep.subr.mxu0 0.0
    %460 = vmatpush2.msra.mxu0 %v254
    %461 = vmatprep.subr.mxu0 0.0
    %462 = vmatpush2.msra.mxu0 %v253
    %463 = vmatprep.subr.mxu0 0.0
    %464 = vmatpush2.msra.mxu0 %v252
    %465 = vmatprep.subr.mxu0 0.0
    %466 = vmatpush2.msra.mxu0 %v251
    %467 = vmatprep.subr.mxu0 0.0
    %468 = vmatpush2.msra.mxu0 %v250
    %469 = vmatprep.subr.mxu0 0.0
    %470 = vmatpush2.msra.mxu0 %v249
    %471 = vmatprep.subr.mxu0 0.0
    %472 = vmatpush2.msra.mxu0 %v248
    %473 = vmatprep.subr.mxu0 0.0
    %474 = vmatpush2.msra.mxu0 %v247
    %475 = vmatprep.subr.mxu0 0.0
    %476 = vmatpush2.msra.mxu0 %v246
    %477 = vmatprep.subr.mxu0 0.0
    %478 = vmatpush2.msra.mxu0 %v245
    %479 = vmatprep.subr.mxu0 0.0
    %480 = vmatpush2.msra.mxu0 %v244
    %481 = vmatprep.subr.mxu0 0.0
    %482 = vmatpush2.msra.mxu0 %v243
    %483 = vmatprep.subr.mxu0 0.0
    %484 = vmatpush2.msra.mxu0 %v242
    %485 = vmatprep.subr.mxu0 0.0
    %486 = vmatpush2.msra.mxu0 %v241
    %487 = vmatprep.subr.mxu0 0.0
    %488 = vmatpush2.msra.mxu0 %v240
    %489 = vmatprep.subr.mxu0 0.0
    %490 = vmatpush2.msra.mxu0 %v239
    %491 = vmatprep.mubr.f32.mxu0 %v90
    %492 = vmatmul.mubr.f32.gmra.mxu0 %v84
    %v493 = vpop.f32.mrf.mxu0
    %v494 = vadd.f32 %v424, %v493
    %v495 = vpop.f32.mrf.mxu0
    %496 = vdwg.mxu0
    %497 = vmatprep.subr.mxu0 0.0
    %498 = vmatpush1.msra.mxu0 %v270
    %499 = vmatprep.subr.mxu0 0.0
    %500 = vmatpush1.msra.mxu0 %v269
    %501 = vmatprep.subr.mxu0 0.0
    %502 = vmatpush1.msra.mxu0 %v268
    %503 = vmatprep.subr.mxu0 0.0
    %504 = vmatpush1.msra.mxu0 %v267
    %505 = vmatprep.subr.mxu0 0.0
    %506 = vmatpush1.msra.mxu0 %v266
    %507 = vmatprep.subr.mxu0 0.0
    %508 = vmatpush1.msra.mxu0 %v265
    %509 = vmatprep.subr.mxu0 0.0
    %510 = vmatpush1.msra.mxu0 %v264
    %511 = vmatprep.subr.mxu0 0.0
    %512 = vmatpush1.msra.mxu0 %v263
    %513 = vmatprep.subr.mxu0 0.0
    %514 = vmatpush1.msra.mxu0 %v262
    %515 = vmatprep.subr.mxu0 0.0
    %516 = vmatpush1.msra.mxu0 %v261
    %517 = vmatprep.subr.mxu0 0.0
    %518 = vmatpush1.msra.mxu0 %v260
    %519 = vmatprep.subr.mxu0 0.0
    %520 = vmatpush1.msra.mxu0 %v259
    %521 = vmatprep.subr.mxu0 0.0
    %522 = vmatpush1.msra.mxu0 %v258
    %523 = vmatprep.subr.mxu0 0.0
    %524 = vmatpush1.msra.mxu0 %v257
    %525 = vmatprep.subr.mxu0 0.0
    %526 = vmatpush1.msra.mxu0 %v256
    %527 = vmatprep.subr.mxu0 0.0
    %528 = vmatpush1.msra.mxu0 %v255
    %529 = vmatprep.subr.mxu0 0.0
    %530 = vmatpush2.msra.mxu0 %v286
    %531 = vmatprep.subr.mxu0 0.0
    %532 = vmatpush2.msra.mxu0 %v285
    %533 = vmatprep.subr.mxu0 0.0
    %534 = vmatpush2.msra.mxu0 %v284
    %535 = vmatprep.subr.mxu0 0.0
    %536 = vmatpush2.msra.mxu0 %v283
    %537 = vmatprep.subr.mxu0 0.0
    %538 = vmatpush2.msra.mxu0 %v282
    %539 = vmatprep.subr.mxu0 0.0
    %540 = vmatpush2.msra.mxu0 %v281
    %541 = vmatprep.subr.mxu0 0.0
    %542 = vmatpush2.msra.mxu0 %v280
    %543 = vmatprep.subr.mxu0 0.0
    %544 = vmatpush2.msra.mxu0 %v279
    %545 = vmatprep.subr.mxu0 0.0
    %546 = vmatpush2.msra.mxu0 %v278
    %547 = vmatprep.subr.mxu0 0.0
    %548 = vmatpush2.msra.mxu0 %v277
    %549 = vmatprep.subr.mxu0 0.0
    %550 = vmatpush2.msra.mxu0 %v276
    %551 = vmatprep.subr.mxu0 0.0
    %552 = vmatpush2.msra.mxu0 %v275
    %553 = vmatprep.subr.mxu0 0.0
    %554 = vmatpush2.msra.mxu0 %v274
    %555 = vmatprep.subr.mxu0 0.0
    %556 = vmatpush2.msra.mxu0 %v273
    %557 = vmatprep.subr.mxu0 0.0
    %558 = vmatpush2.msra.mxu0 %v272
    %559 = vmatprep.subr.mxu0 0.0
    %560 = vmatpush2.msra.mxu0 %v271
    %561 = vmatprep.mubr.f32.mxu0 %v102
    %562 = vmatmul.mubr.f32.gmra.mxu0 %v96
    %v563 = vpop.f32.mrf.mxu0
    %v564 = vadd.f32 %v494, %v563
    %v565 = vpop.f32.mrf.mxu0
    %566 = vdwg.mxu0
    %567 = vmatprep.subr.mxu0 0.0
    %568 = vmatpush1.msra.mxu0 %v174
    %569 = vmatprep.subr.mxu0 0.0
    %570 = vmatpush1.msra.mxu0 %v173
    %571 = vmatprep.subr.mxu0 0.0
    %572 = vmatpush1.msra.mxu0 %v172
    %573 = vmatprep.subr.mxu0 0.0
    %574 = vmatpush1.msra.mxu0 %v171
    %575 = vmatprep.subr.mxu0 0.0
    %576 = vmatpush1.msra.mxu0 %v170
    %577 = vmatprep.subr.mxu0 0.0
    %578 = vmatpush1.msra.mxu0 %v169
    %579 = vmatprep.subr.mxu0 0.0
    %580 = vmatpush1.msra.mxu0 %v168
    %581 = vmatprep.subr.mxu0 0.0
    %582 = vmatpush1.msra.mxu0 %v167
    %583 = vmatprep.subr.mxu0 0.0
    %584 = vmatpush1.msra.mxu0 %v166
    %585 = vmatprep.subr.mxu0 0.0
    %586 = vmatpush1.msra.mxu0 %v165
    %587 = vmatprep.subr.mxu0 0.0
    %588 = vmatpush1.msra.mxu0 %v164
    %589 = vmatprep.subr.mxu0 0.0
    %590 = vmatpush1.msra.mxu0 %v163
    %591 = vmatprep.subr.mxu0 0.0
    %592 = vmatpush1.msra.mxu0 %v162
    %593 = vmatprep.subr.mxu0 0.0
    %594 = vmatpush1.msra.mxu0 %v161
    %595 = vmatprep.subr.mxu0 0.0
    %596 = vmatpush1.msra.mxu0 %v160
    %597 = vmatprep.subr.mxu0 0.0
    %598 = vmatpush1.msra.mxu0 %v159
    %599 = vmatprep.subr.mxu0 0.0
    %600 = vmatpush2.msra.mxu0 %v190
    %601 = vmatprep.subr.mxu0 0.0
    %602 = vmatpush2.msra.mxu0 %v189
    %603 = vmatprep.subr.mxu0 0.0
    %604 = vmatpush2.msra.mxu0 %v188
    %605 = vmatprep.subr.mxu0 0.0
    %606 = vmatpush2.msra.mxu0 %v187
    %607 = vmatprep.subr.mxu0 0.0
    %608 = vmatpush2.msra.mxu0 %v186
    %609 = vmatprep.subr.mxu0 0.0
    %610 = vmatpush2.msra.mxu0 %v185
    %611 = vmatprep.subr.mxu0 0.0
    %612 = vmatpush2.msra.mxu0 %v184
    %613 = vmatprep.subr.mxu0 0.0
    %614 = vmatpush2.msra.mxu0 %v183
    %615 = vmatprep.subr.mxu0 0.0
    %616 = vmatpush2.msra.mxu0 %v182
    %617 = vmatprep.subr.mxu0 0.0
    %618 = vmatpush2.msra.mxu0 %v181
    %619 = vmatprep.subr.mxu0 0.0
    %620 = vmatpush2.msra.mxu0 %v180
    %621 = vmatprep.subr.mxu0 0.0
    %622 = vmatpush2.msra.mxu0 %v179
    %623 = vmatprep.subr.mxu0 0.0
    %624 = vmatpush2.msra.mxu0 %v178
    %625 = vmatprep.subr.mxu0 0.0
    %626 = vmatpush2.msra.mxu0 %v177
    %627 = vmatprep.subr.mxu0 0.0
    %628 = vmatpush2.msra.mxu0 %v176
    %629 = vmatprep.subr.mxu0 0.0
    %630 = vmatpush2.msra.mxu0 %v175
    %631 = vmatprep.mubr.f32.mxu0 %v122
    %632 = vmatmul.mubr.f32.gmra.mxu0 %v116
    %v633 = vpop.f32.mrf.mxu0
    %v634 = vadd.f32 0.0, %v633
    %v635 = vpop.f32.mrf.mxu0
    %636 = vdwg.mxu0
    %637 = vmatprep.subr.mxu0 0.0
    %638 = vmatpush1.msra.mxu0 %v206
    %639 = vmatprep.subr.mxu0 0.0
    %640 = vmatpush1.msra.mxu0 %v205
    %641 = vmatprep.subr.mxu0 0.0
    %642 = vmatpush1.msra.mxu0 %v204
    %643 = vmatprep.subr.mxu0 0.0
    %644 = vmatpush1.msra.mxu0 %v203
    %645 = vmatprep.subr.mxu0 0.0
    %646 = vmatpush1.msra.mxu0 %v202
    %647 = vmatprep.subr.mxu0 0.0
    %648 = vmatpush1.msra.mxu0 %v201
    %649 = vmatprep.subr.mxu0 0.0
    %650 = vmatpush1.msra.mxu0 %v200
    %651 = vmatprep.subr.mxu0 0.0
    %652 = vmatpush1.msra.mxu0 %v199
    %653 = vmatprep.subr.mxu0 0.0
    %654 = vmatpush1.msra.mxu0 %v198
    %655 = vmatprep.subr.mxu0 0.0
    %656 = vmatpush1.msra.mxu0 %v197
    %657 = vmatprep.subr.mxu0 0.0
    %658 = vmatpush1.msra.mxu0 %v196
    %659 = vmatprep.subr.mxu0 0.0
    %660 = vmatpush1.msra.mxu0 %v195
    %661 = vmatprep.subr.mxu0 0.0
    %662 = vmatpush1.msra.mxu0 %v194
    %663 = vmatprep.subr.mxu0 0.0
    %664 = vmatpush1.msra.mxu0 %v193
    %665 = vmatprep.subr.mxu0 0.0
    %666 = vmatpush1.msra.mxu0 %v192
    %667 = vmatprep.subr.mxu0 0.0
    %668 = vmatpush1.msra.mxu0 %v191
    %669 = vmatprep.subr.mxu0 0.0
    %670 = vmatpush2.msra.mxu0 %v222
    %671 = vmatprep.subr.mxu0 0.0
    %672 = vmatpush2.msra.mxu0 %v221
    %673 = vmatprep.subr.mxu0 0.0
    %674 = vmatpush2.msra.mxu0 %v220
    %675 = vmatprep.subr.mxu0 0.0
    %676 = vmatpush2.msra.mxu0 %v219
    %677 = vmatprep.subr.mxu0 0.0
    %678 = vmatpush2.msra.mxu0 %v218
    %679 = vmatprep.subr.mxu0 0.0
    %680 = vmatpush2.msra.mxu0 %v217
    %681 = vmatprep.subr.mxu0 0.0
    %682 = vmatpush2.msra.mxu0 %v216
    %683 = vmatprep.subr.mxu0 0.0
    %684 = vmatpush2.msra.mxu0 %v215
    %685 = vmatprep.subr.mxu0 0.0
    %686 = vmatpush2.msra.mxu0 %v214
    %687 = vmatprep.subr.mxu0 0.0
    %688 = vmatpush2.msra.mxu0 %v213
    %689 = vmatprep.subr.mxu0 0.0
    %690 = vmatpush2.msra.mxu0 %v212
    %691 = vmatprep.subr.mxu0 0.0
    %692 = vmatpush2.msra.mxu0 %v211
    %693 = vmatprep.subr.mxu0 0.0
    %694 = vmatpush2.msra.mxu0 %v210
    %695 = vmatprep.subr.mxu0 0.0
    %696 = vmatpush2.msra.mxu0 %v209
    %697 = vmatprep.subr.mxu0 0.0
    %698 = vmatpush2.msra.mxu0 %v208
    %699 = vmatprep.subr.mxu0 0.0
    %700 = vmatpush2.msra.mxu0 %v207
    %701 = vmatprep.mubr.f32.mxu0 %v134
    %702 = vmatmul.mubr.f32.gmra.mxu0 %v128
    %v703 = vpop.f32.mrf.mxu0
    %v704 = vadd.f32 %v634, %v703
    %v705 = vpop.f32.mrf.mxu0
    %706 = vdwg.mxu0
    %707 = vmatprep.subr.mxu0 0.0
    %708 = vmatpush1.msra.mxu0 %v238
    %709 = vmatprep.subr.mxu0 0.0
    %710 = vmatpush1.msra.mxu0 %v237
    %711 = vmatprep.subr.mxu0 0.0
    %712 = vmatpush1.msra.mxu0 %v236
    %713 = vmatprep.subr.mxu0 0.0
    %714 = vmatpush1.msra.mxu0 %v235
    %715 = vmatprep.subr.mxu0 0.0
    %716 = vmatpush1.msra.mxu0 %v234
    %717 = vmatprep.subr.mxu0 0.0
    %718 = vmatpush1.msra.mxu0 %v233
    %719 = vmatprep.subr.mxu0 0.0
    %720 = vmatpush1.msra.mxu0 %v232
    %721 = vmatprep.subr.mxu0 0.0
    %722 = vmatpush1.msra.mxu0 %v231
    %723 = vmatprep.subr.mxu0 0.0
    %724 = vmatpush1.msra.mxu0 %v230
    %725 = vmatprep.subr.mxu0 0.0
    %726 = vmatpush1.msra.mxu0 %v229
    %727 = vmatprep.subr.mxu0 0.0
    %728 = vmatpush1.msra.mxu0 %v228
    %729 = vmatprep.subr.mxu0 0.0
    %730 = vmatpush1.msra.mxu0 %v227
    %731 = vmatprep.subr.mxu0 0.0
    %732 = vmatpush1.msra.mxu0 %v226
    %733 = vmatprep.subr.mxu0 0.0
    %734 = vmatpush1.msra.mxu0 %v225
    %735 = vmatprep.subr.mxu0 0.0
    %736 = vmatpush1.msra.mxu0 %v224
    %737 = vmatprep.subr.mxu0 0.0
    %738 = vmatpush1.msra.mxu0 %v223
    %739 = vmatprep.subr.mxu0 0.0
    %740 = vmatpush2.msra.mxu0 %v254
    %741 = vmatprep.subr.mxu0 0.0
    %742 = vmatpush2.msra.mxu0 %v253
    %743 = vmatprep.subr.mxu0 0.0
    %744 = vmatpush2.msra.mxu0 %v252
    %745 = vmatprep.subr.mxu0 0.0
    %746 = vmatpush2.msra.mxu0 %v251
    %747 = vmatprep.subr.mxu0 0.0
    %748 = vmatpush2.msra.mxu0 %v250
    %749 = vmatprep.subr.mxu0 0.0
    %750 = vmatpush2.msra.mxu0 %v249
    %751 = vmatprep.subr.mxu0 0.0
    %752 = vmatpush2.msra.mxu0 %v248
    %753 = vmatprep.subr.mxu0 0.0
    %754 = vmatpush2.msra.mxu0 %v247
    %755 = vmatprep.subr.mxu0 0.0
    %756 = vmatpush2.msra.mxu0 %v246
    %757 = vmatprep.subr.mxu0 0.0
    %758 = vmatpush2.msra.mxu0 %v245
    %759 = vmatprep.subr.mxu0 0.0
    %760 = vmatpush2.msra.mxu0 %v244
    %761 = vmatprep.subr.mxu0 0.0
    %762 = vmatpush2.msra.mxu0 %v243
    %763 = vmatprep.subr.mxu0 0.0
    %764 = vmatpush2.msra.mxu0 %v242
    %765 = vmatprep.subr.mxu0 0.0
    %766 = vmatpush2.msra.mxu0 %v241
    %767 = vmatprep.subr.mxu0 0.0
    %768 = vmatpush2.msra.mxu0 %v240
    %769 = vmatprep.subr.mxu0 0.0
    %770 = vmatpush2.msra.mxu0 %v239
    %771 = vmatprep.mubr.f32.mxu0 %v146
    %772 = vmatmul.mubr.f32.gmra.mxu0 %v140
    %v773 = vpop.f32.mrf.mxu0
    %v774 = vadd.f32 %v704, %v773
    %v775 = vpop.f32.mrf.mxu0
    %776 = vdwg.mxu0
    %777 = vmatprep.subr.mxu0 0.0
    %778 = vmatpush1.msra.mxu0 %v270
    %779 = vmatprep.subr.mxu0 0.0
    %780 = vmatpush1.msra.mxu0 %v269
    %781 = vmatprep.subr.mxu0 0.0
    %782 = vmatpush1.msra.mxu0 %v268
    %783 = vmatprep.subr.mxu0 0.0
    %784 = vmatpush1.msra.mxu0 %v267
    %785 = vmatprep.subr.mxu0 0.0
    %786 = vmatpush1.msra.mxu0 %v266
    %787 = vmatprep.subr.mxu0 0.0
    %788 = vmatpush1.msra.mxu0 %v265
    %789 = vmatprep.subr.mxu0 0.0
    %790 = vmatpush1.msra.mxu0 %v264
    %791 = vmatprep.subr.mxu0 0.0
    %792 = vmatpush1.msra.mxu0 %v263
    %793 = vmatprep.subr.mxu0 0.0
    %794 = vmatpush1.msra.mxu0 %v262
    %795 = vmatprep.subr.mxu0 0.0
    %796 = vmatpush1.msra.mxu0 %v261
    %797 = vmatprep.subr.mxu0 0.0
    %798 = vmatpush1.msra.mxu0 %v260
    %799 = vmatprep.subr.mxu0 0.0
    %800 = vmatpush1.msra.mxu0 %v259
    %801 = vmatprep.subr.mxu0 0.0
    %802 = vmatpush1.msra.mxu0 %v258
    %803 = vmatprep.subr.mxu0 0.0
    %804 = vmatpush1.msra.mxu0 %v257
    %805 = vmatprep.subr.mxu0 0.0
    %806 = vmatpush1.msra.mxu0 %v256
    %807 = vmatprep.subr.mxu0 0.0
    %808 = vmatpush1.msra.mxu0 %v255
    %809 = vmatprep.subr.mxu0 0.0
    %810 = vmatpush2.msra.mxu0 %v286
    %811 = vmatprep.subr.mxu0 0.0
    %812 = vmatpush2.msra.mxu0 %v285
    %813 = vmatprep.subr.mxu0 0.0
    %814 = vmatpush2.msra.mxu0 %v284
    %815 = vmatprep.subr.mxu0 0.0
    %816 = vmatpush2.msra.mxu0 %v283
    %817 = vmatprep.subr.mxu0 0.0
    %818 = vmatpush2.msra.mxu0 %v282
    %819 = vmatprep.subr.mxu0 0.0
    %820 = vmatpush2.msra.mxu0 %v281
    %821 = vmatprep.subr.mxu0 0.0
    %822 = vmatpush2.msra.mxu0 %v280
    %823 = vmatprep.subr.mxu0 0.0
    %824 = vmatpush2.msra.mxu0 %v279
    %825 = vmatprep.subr.mxu0 0.0
    %826 = vmatpush2.msra.mxu0 %v278
    %827 = vmatprep.subr.mxu0 0.0
    %828 = vmatpush2.msra.mxu0 %v277
    %829 = vmatprep.subr.mxu0 0.0
    %830 = vmatpush2.msra.mxu0 %v276
    %831 = vmatprep.subr.mxu0 0.0
    %832 = vmatpush2.msra.mxu0 %v275
    %833 = vmatprep.subr.mxu0 0.0
    %834 = vmatpush2.msra.mxu0 %v274
    %835 = vmatprep.subr.mxu0 0.0
    %836 = vmatpush2.msra.mxu0 %v273
    %837 = vmatprep.subr.mxu0 0.0
    %838 = vmatpush2.msra.mxu0 %v272
    %839 = vmatprep.subr.mxu0 0.0
    %840 = vmatpush2.msra.mxu0 %v271
    %841 = vmatprep.mubr.f32.mxu0 %v158
    %842 = vmatmul.mubr.f32.gmra.mxu0 %v152
    %v843 = vpop.f32.mrf.mxu0
    %v844 = vadd.f32 %v774, %v843
    %v845 = vpop.f32.mrf.mxu0
    %846 = vdwg.mxu0
    %v847 = vmul.f32 %v564, 0.001953125
    %v848 = vmul.f32 %v844, 0.001953125
    %v849 = vmul.f32 %v847, %v847
    %v850 = vsub.f32 %v848, %v849
    %v851 = vmax.f32 %v850, 0.0
    %v852 = vadd.f32 %v851, 1e-05
    %v853 = vrsqrt.pop %v852
    %v854 = vld [vmem:[%s1] sm:$0x1]
    %v855 = vmul.f32 %v853, %v854
    %v856 = vld [vmem:[%s2] sm:$0x1]
    %v857 = vmul.f32 %v847, %v855
    %v858 = vsub.f32 %v856, %v857
    %v859 = vld [vmem:[%s3] sm:$0xff]
    %v860 = vld [vmem:[%s3 + $0x8] sm:$0xff]
    %v861 = vld [vmem:[%s3 + $0x10] sm:$0xff]
    %v862 = vld [vmem:[%s3 + $0x18] sm:$0xff]
    %v867 = vcombine.high %v859, %v859
    %v868 = vcombine.high %v860, %v860
    %v869 = vcombine.high %v861, %v861
    %v870 = vcombine.high %v862, %v862
    %vm871 = vcmask 31744
    %v873 = vsel %vm871, %v855, 0
    %vm875 = vcmask 1043456
    %v876 = vsel %vm875, %v859, 0
    %v878 = vsel %vm875, %v867, 0
    %v880 = vsel %vm875, %v860, 0
    %v882 = vsel %vm875, %v868, 0
    %v884 = vsel %vm875, %v861, 0
    %v886 = vsel %vm875, %v869, 0
    %v888 = vsel %vm875, %v862, 0
    %v890 = vsel %vm875, %v870, 0
    %892 = vmatprep.subr.mxu0 0.0
    %893 = vmatpush1.msra.mxu0 0.0
    %894 = vmatprep.subr.mxu0 0.0
    %895 = vmatpush1.msra.mxu0 0.0
    %896 = vmatprep.subr.mxu0 0.0
    %897 = vmatpush1.msra.mxu0 0.0
    %898 = vmatprep.subr.mxu0 0.0
    %899 = vmatpush1.msra.mxu0 0.0
    %900 = vmatprep.subr.mxu0 0.0
    %901 = vmatpush1.msra.mxu0 0.0
    %902 = vmatprep.subr.mxu0 0.0
    %903 = vmatpush1.msra.mxu0 0.0
    %904 = vmatprep.subr.mxu0 0.0
    %905 = vmatpush1.msra.mxu0 0.0
    %906 = vmatprep.subr.mxu0 0.0
    %907 = vmatpush1.msra.mxu0 0.0
    %908 = vmatprep.subr.mxu0 0.0
    %909 = vmatpush1.msra.mxu0 0.0
    %910 = vmatprep.subr.mxu0 0.0
    %911 = vmatpush1.msra.mxu0 0.0
    %912 = vmatprep.subr.mxu0 0.0
    %913 = vmatpush1.msra.mxu0 0.0
    %914 = vmatprep.subr.mxu0 0.0
    %915 = vmatpush1.msra.mxu0 0.0
    %916 = vmatprep.subr.mxu0 0.0
    %917 = vmatpush1.msra.mxu0 0.0
    %918 = vmatprep.subr.mxu0 0.0
    %919 = vmatpush1.msra.mxu0 0.0
    %920 = vmatprep.subr.mxu0 0.0
    %921 = vmatpush1.msra.mxu0 0.0
    %922 = vmatprep.subr.mxu0 %v878
    %923 = vmatpush1.msra.mxu0 %v876
    %924 = vmatprep.subr.mxu0 0.0
    %925 = vmatpush2.msra.mxu0 0.0
    %926 = vmatprep.subr.mxu0 0.0
    %927 = vmatpush2.msra.mxu0 0.0
    %928 = vmatprep.subr.mxu0 0.0
    %929 = vmatpush2.msra.mxu0 0.0
    %930 = vmatprep.subr.mxu0 0.0
    %931 = vmatpush2.msra.mxu0 0.0
    %932 = vmatprep.subr.mxu0 0.0
    %933 = vmatpush2.msra.mxu0 0.0
    %934 = vmatprep.subr.mxu0 0.0
    %935 = vmatpush2.msra.mxu0 0.0
    %936 = vmatprep.subr.mxu0 0.0
    %937 = vmatpush2.msra.mxu0 0.0
    %938 = vmatprep.subr.mxu0 0.0
    %939 = vmatpush2.msra.mxu0 0.0
    %940 = vmatprep.subr.mxu0 0.0
    %941 = vmatpush2.msra.mxu0 0.0
    %942 = vmatprep.subr.mxu0 0.0
    %943 = vmatpush2.msra.mxu0 0.0
    %944 = vmatprep.subr.mxu0 0.0
    %945 = vmatpush2.msra.mxu0 0.0
    %946 = vmatprep.subr.mxu0 0.0
    %947 = vmatpush2.msra.mxu0 0.0
    %948 = vmatprep.subr.mxu0 0.0
    %949 = vmatpush2.msra.mxu0 0.0
    %950 = vmatprep.subr.mxu0 0.0
    %951 = vmatpush2.msra.mxu0 0.0
    %952 = vmatprep.subr.mxu0 0.0
    %953 = vmatpush2.msra.mxu0 0.0
    %954 = vmatprep.subr.mxu0 0.0
    %955 = vmatpush2.msra.mxu0 0.0
    %956 = vmatprep.mubr.f32.mxu0 0.0
    %957 = vmatmul.mubr.f32.gmra.mxu0 %v873
    %v958 = vpop.f32.mrf.mxu0
    %v959 = vadd.f32 0.0, %v958
    %v960 = vpop.f32.mrf.mxu0
    %v961 = vadd.f32 0.0, %v960
    %962 = vdwg.mxu0
    %963 = vmatprep.subr.mxu0 0.0
    %964 = vmatpush1.msra.mxu0 0.0
    %965 = vmatprep.subr.mxu0 0.0
    %966 = vmatpush1.msra.mxu0 0.0
    %967 = vmatprep.subr.mxu0 0.0
    %968 = vmatpush1.msra.mxu0 0.0
    %969 = vmatprep.subr.mxu0 0.0
    %970 = vmatpush1.msra.mxu0 0.0
    %971 = vmatprep.subr.mxu0 0.0
    %972 = vmatpush1.msra.mxu0 0.0
    %973 = vmatprep.subr.mxu0 0.0
    %974 = vmatpush1.msra.mxu0 0.0
    %975 = vmatprep.subr.mxu0 0.0
    %976 = vmatpush1.msra.mxu0 0.0
    %977 = vmatprep.subr.mxu0 0.0
    %978 = vmatpush1.msra.mxu0 0.0
    %979 = vmatprep.subr.mxu0 0.0
    %980 = vmatpush1.msra.mxu0 0.0
    %981 = vmatprep.subr.mxu0 0.0
    %982 = vmatpush1.msra.mxu0 0.0
    %983 = vmatprep.subr.mxu0 0.0
    %984 = vmatpush1.msra.mxu0 0.0
    %985 = vmatprep.subr.mxu0 0.0
    %986 = vmatpush1.msra.mxu0 0.0
    %987 = vmatprep.subr.mxu0 0.0
    %988 = vmatpush1.msra.mxu0 0.0
    %989 = vmatprep.subr.mxu0 0.0
    %990 = vmatpush1.msra.mxu0 0.0
    %991 = vmatprep.subr.mxu0 0.0
    %992 = vmatpush1.msra.mxu0 0.0
    %993 = vmatprep.subr.mxu0 %v882
    %994 = vmatpush1.msra.mxu0 %v880
    %995 = vmatprep.subr.mxu0 0.0
    %996 = vmatpush2.msra.mxu0 0.0
    %997 = vmatprep.subr.mxu0 0.0
    %998 = vmatpush2.msra.mxu0 0.0
    %999 = vmatprep.subr.mxu0 0.0
    %1000 = vmatpush2.msra.mxu0 0.0
    %1001 = vmatprep.subr.mxu0 0.0
    %1002 = vmatpush2.msra.mxu0 0.0
    %1003 = vmatprep.subr.mxu0 0.0
    %1004 = vmatpush2.msra.mxu0 0.0
    %1005 = vmatprep.subr.mxu0 0.0
    %1006 = vmatpush2.msra.mxu0 0.0
    %1007 = vmatprep.subr.mxu0 0.0
    %1008 = vmatpush2.msra.mxu0 0.0
    %1009 = vmatprep.subr.mxu0 0.0
    %1010 = vmatpush2.msra.mxu0 0.0
    %1011 = vmatprep.subr.mxu0 0.0
    %1012 = vmatpush2.msra.mxu0 0.0
    %1013 = vmatprep.subr.mxu0 0.0
    %1014 = vmatpush2.msra.mxu0 0.0
    %1015 = vmatprep.subr.mxu0 0.0
    %1016 = vmatpush2.msra.mxu0 0.0
    %1017 = vmatprep.subr.mxu0 0.0
    %1018 = vmatpush2.msra.mxu0 0.0
    %1019 = vmatprep.subr.mxu0 0.0
    %1020 = vmatpush2.msra.mxu0 0.0
    %1021 = vmatprep.subr.mxu0 0.0
    %1022 = vmatpush2.msra.mxu0 0.0
    %1023 = vmatprep.subr.mxu0 0.0
    %1024 = vmatpush2.msra.mxu0 0.0
    %1025 = vmatprep.subr.mxu0 0.0
    %1026 = vmatpush2.msra.mxu0 0.0
    %1027 = vmatprep.mubr.f32.mxu0 0.0
    %1028 = vmatmul.mubr.f32.gmra.mxu0 %v873
    %v1029 = vpop.f32.mrf.mxu0
    %v1030 = vadd.f32 0.0, %v1029
    %v1031 = vpop.f32.mrf.mxu0
    %v1032 = vadd.f32 0.0, %v1031
    %1033 = vdwg.mxu0
    %1034 = vmatprep.subr.mxu0 0.0
    %1035 = vmatpush1.msra.mxu0 0.0
    %1036 = vmatprep.subr.mxu0 0.0
    %1037 = vmatpush1.msra.mxu0 0.0
    %1038 = vmatprep.subr.mxu0 0.0
    %1039 = vmatpush1.msra.mxu0 0.0
    %1040 = vmatprep.subr.mxu0 0.0
    %1041 = vmatpush1.msra.mxu0 0.0
    %1042 = vmatprep.subr.mxu0 0.0
    %1043 = vmatpush1.msra.mxu0 0.0
    %1044 = vmatprep.subr.mxu0 0.0
    %1045 = vmatpush1.msra.mxu0 0.0
    %1046 = vmatprep.subr.mxu0 0.0
    %1047 = vmatpush1.msra.mxu0 0.0
    %1048 = vmatprep.subr.mxu0 0.0
    %1049 = vmatpush1.msra.mxu0 0.0
    %1050 = vmatprep.subr.mxu0 0.0
    %1051 = vmatpush1.msra.mxu0 0.0
    %1052 = vmatprep.subr.mxu0 0.0
    %1053 = vmatpush1.msra.mxu0 0.0
    %1054 = vmatprep.subr.mxu0 0.0
    %1055 = vmatpush1.msra.mxu0 0.0
    %1056 = vmatprep.subr.mxu0 0.0
    %1057 = vmatpush1.msra.mxu0 0.0
    %1058 = vmatprep.subr.mxu0 0.0
    %1059 = vmatpush1.msra.mxu0 0.0
    %1060 = vmatprep.subr.mxu0 0.0
    %1061 = vmatpush1.msra.mxu0 0.0
    %1062 = vmatprep.subr.mxu0 0.0
    %1063 = vmatpush1.msra.mxu0 0.0
    %1064 = vmatprep.subr.mxu0 %v886
    %1065 = vmatpush1.msra.mxu0 %v884
    %1066 = vmatprep.subr.mxu0 0.0
    %1067 = vmatpush2.msra.mxu0 0.0
    %1068 = vmatprep.subr.mxu0 0.0
    %1069 = vmatpush2.msra.mxu0 0.0
    %1070 = vmatprep.subr.mxu0 0.0
    %1071 = vmatpush2.msra.mxu0 0.0
    %1072 = vmatprep.subr.mxu0 0.0
    %1073 = vmatpush2.msra.mxu0 0.0
    %1074 = vmatprep.subr.mxu0 0.0
    %1075 = vmatpush2.msra.mxu0 0.0
    %1076 = vmatprep.subr.mxu0 0.0
    %1077 = vmatpush2.msra.mxu0 0.0
    %1078 = vmatprep.subr.mxu0 0.0
    %1079 = vmatpush2.msra.mxu0 0.0
    %1080 = vmatprep.subr.mxu0 0.0
    %1081 = vmatpush2.msra.mxu0 0.0
    %1082 = vmatprep.subr.mxu0 0.0
    %1083 = vmatpush2.msra.mxu0 0.0
    %1084 = vmatprep.subr.mxu0 0.0
    %1085 = vmatpush2.msra.mxu0 0.0
    %1086 = vmatprep.subr.mxu0 0.0
    %1087 = vmatpush2.msra.mxu0 0.0
    %1088 = vmatprep.subr.mxu0 0.0
    %1089 = vmatpush2.msra.mxu0 0.0
    %1090 = vmatprep.subr.mxu0 0.0
    %1091 = vmatpush2.msra.mxu0 0.0
    %1092 = vmatprep.subr.mxu0 0.0
    %1093 = vmatpush2.msra.mxu0 0.0
    %1094 = vmatprep.subr.mxu0 0.0
    %1095 = vmatpush2.msra.mxu0 0.0
    %1096 = vmatprep.subr.mxu0 0.0
    %1097 = vmatpush2.msra.mxu0 0.0
    %1098 = vmatprep.mubr.f32.mxu0 0.0
    %1099 = vmatmul.mubr.f32.gmra.mxu0 %v873
    %v1100 = vpop.f32.mrf.mxu0
    %v1101 = vadd.f32 0.0, %v1100
    %v1102 = vpop.f32.mrf.mxu0
    %v1103 = vadd.f32 0.0, %v1102
    %1104 = vdwg.mxu0
    %1105 = vmatprep.subr.mxu0 0.0
    %1106 = vmatpush1.msra.mxu0 0.0
    %1107 = vmatprep.subr.mxu0 0.0
    %1108 = vmatpush1.msra.mxu0 0.0
    %1109 = vmatprep.subr.mxu0 0.0
    %1110 = vmatpush1.msra.mxu0 0.0
    %1111 = vmatprep.subr.mxu0 0.0
    %1112 = vmatpush1.msra.mxu0 0.0
    %1113 = vmatprep.subr.mxu0 0.0
    %1114 = vmatpush1.msra.mxu0 0.0
    %1115 = vmatprep.subr.mxu0 0.0
    %1116 = vmatpush1.msra.mxu0 0.0
    %1117 = vmatprep.subr.mxu0 0.0
    %1118 = vmatpush1.msra.mxu0 0.0
    %1119 = vmatprep.subr.mxu0 0.0
    %1120 = vmatpush1.msra.mxu0 0.0
    %1121 = vmatprep.subr.mxu0 0.0
    %1122 = vmatpush1.msra.mxu0 0.0
    %1123 = vmatprep.subr.mxu0 0.0
    %1124 = vmatpush1.msra.mxu0 0.0
    %1125 = vmatprep.subr.mxu0 0.0
    %1126 = vmatpush1.msra.mxu0 0.0
    %1127 = vmatprep.subr.mxu0 0.0
    %1128 = vmatpush1.msra.mxu0 0.0
    %1129 = vmatprep.subr.mxu0 0.0
    %1130 = vmatpush1.msra.mxu0 0.0
    %1131 = vmatprep.subr.mxu0 0.0
    %1132 = vmatpush1.msra.mxu0 0.0
    %1133 = vmatprep.subr.mxu0 0.0
    %1134 = vmatpush1.msra.mxu0 0.0
    %1135 = vmatprep.subr.mxu0 %v890
    %1136 = vmatpush1.msra.mxu0 %v888
    %1137 = vmatprep.subr.mxu0 0.0
    %1138 = vmatpush2.msra.mxu0 0.0
    %1139 = vmatprep.subr.mxu0 0.0
    %1140 = vmatpush2.msra.mxu0 0.0
    %1141 = vmatprep.subr.mxu0 0.0
    %1142 = vmatpush2.msra.mxu0 0.0
    %1143 = vmatprep.subr.mxu0 0.0
    %1144 = vmatpush2.msra.mxu0 0.0
    %1145 = vmatprep.subr.mxu0 0.0
    %1146 = vmatpush2.msra.mxu0 0.0
    %1147 = vmatprep.subr.mxu0 0.0
    %1148 = vmatpush2.msra.mxu0 0.0
    %1149 = vmatprep.subr.mxu0 0.0
    %1150 = vmatpush2.msra.mxu0 0.0
    %1151 = vmatprep.subr.mxu0 0.0
    %1152 = vmatpush2.msra.mxu0 0.0
    %1153 = vmatprep.subr.mxu0 0.0
    %1154 = vmatpush2.msra.mxu0 0.0
    %1155 = vmatprep.subr.mxu0 0.0
    %1156 = vmatpush2.msra.mxu0 0.0
    %1157 = vmatprep.subr.mxu0 0.0
    %1158 = vmatpush2.msra.mxu0 0.0
    %1159 = vmatprep.subr.mxu0 0.0
    %1160 = vmatpush2.msra.mxu0 0.0
    %1161 = vmatprep.subr.mxu0 0.0
    %1162 = vmatpush2.msra.mxu0 0.0
    %1163 = vmatprep.subr.mxu0 0.0
    %1164 = vmatpush2.msra.mxu0 0.0
    %1165 = vmatprep.subr.mxu0 0.0
    %1166 = vmatpush2.msra.mxu0 0.0
    %1167 = vmatprep.subr.mxu0 0.0
    %1168 = vmatpush2.msra.mxu0 0.0
    %1169 = vmatprep.mubr.f32.mxu0 0.0
    %1170 = vmatmul.mubr.f32.gmra.mxu0 %v873
    %v1171 = vpop.f32.mrf.mxu0
    %v1172 = vadd.f32 0.0, %v1171
    %v1173 = vpop.f32.mrf.mxu0
    %v1174 = vadd.f32 0.0, %v1173
    %1175 = vdwg.mxu0
    %v1177 = vsel %vm871, %v858, 0
    %1179 = vmatprep.subr.mxu0 0.0
    %1180 = vmatpush1.msra.mxu0 0.0
    %1181 = vmatprep.subr.mxu0 0.0
    %1182 = vmatpush1.msra.mxu0 0.0
    %1183 = vmatprep.subr.mxu0 0.0
    %1184 = vmatpush1.msra.mxu0 0.0
    %1185 = vmatprep.subr.mxu0 0.0
    %1186 = vmatpush1.msra.mxu0 0.0
    %1187 = vmatprep.subr.mxu0 0.0
    %1188 = vmatpush1.msra.mxu0 0.0
    %1189 = vmatprep.subr.mxu0 0.0
    %1190 = vmatpush1.msra.mxu0 0.0
    %1191 = vmatprep.subr.mxu0 0.0
    %1192 = vmatpush1.msra.mxu0 0.0
    %1193 = vmatprep.subr.mxu0 0.0
    %1194 = vmatpush1.msra.mxu0 0.0
    %1195 = vmatprep.subr.mxu0 0.0
    %1196 = vmatpush1.msra.mxu0 0.0
    %1197 = vmatprep.subr.mxu0 0.0
    %1198 = vmatpush1.msra.mxu0 0.0
    %1199 = vmatprep.subr.mxu0 0.0
    %1200 = vmatpush1.msra.mxu0 0.0
    %1201 = vmatprep.subr.mxu0 0.0
    %1202 = vmatpush1.msra.mxu0 0.0
    %1203 = vmatprep.subr.mxu0 0.0
    %1204 = vmatpush1.msra.mxu0 0.0
    %1205 = vmatprep.subr.mxu0 0.0
    %1206 = vmatpush1.msra.mxu0 0.0
    %1207 = vmatprep.subr.mxu0 0.0
    %1208 = vmatpush1.msra.mxu0 0.0
    %1209 = vmatprep.subr.mxu0 %v878
    %1210 = vmatpush1.msra.mxu0 %v876
    %1211 = vmatprep.subr.mxu0 0.0
    %1212 = vmatpush2.msra.mxu0 0.0
    %1213 = vmatprep.subr.mxu0 0.0
    %1214 = vmatpush2.msra.mxu0 0.0
    %1215 = vmatprep.subr.mxu0 0.0
    %1216 = vmatpush2.msra.mxu0 0.0
    %1217 = vmatprep.subr.mxu0 0.0
    %1218 = vmatpush2.msra.mxu0 0.0
    %1219 = vmatprep.subr.mxu0 0.0
    %1220 = vmatpush2.msra.mxu0 0.0
    %1221 = vmatprep.subr.mxu0 0.0
    %1222 = vmatpush2.msra.mxu0 0.0
    %1223 = vmatprep.subr.mxu0 0.0
    %1224 = vmatpush2.msra.mxu0 0.0
    %1225 = vmatprep.subr.mxu0 0.0
    %1226 = vmatpush2.msra.mxu0 0.0
    %1227 = vmatprep.subr.mxu0 0.0
    %1228 = vmatpush2.msra.mxu0 0.0
    %1229 = vmatprep.subr.mxu0 0.0
    %1230 = vmatpush2.msra.mxu0 0.0
    %1231 = vmatprep.subr.mxu0 0.0
    %1232 = vmatpush2.msra.mxu0 0.0
    %1233 = vmatprep.subr.mxu0 0.0
    %1234 = vmatpush2.msra.mxu0 0.0
    %1235 = vmatprep.subr.mxu0 0.0
    %1236 = vmatpush2.msra.mxu0 0.0
    %1237 = vmatprep.subr.mxu0 0.0
    %1238 = vmatpush2.msra.mxu0 0.0
    %1239 = vmatprep.subr.mxu0 0.0
    %1240 = vmatpush2.msra.mxu0 0.0
    %1241 = vmatprep.subr.mxu0 0.0
    %1242 = vmatpush2.msra.mxu0 0.0
    %1243 = vmatprep.mubr.f32.mxu0 0.0
    %1244 = vmatmul.mubr.f32.gmra.mxu0 %v1177
    %v1245 = vpop.f32.mrf.mxu0
    %v1246 = vadd.f32 0.0, %v1245
    %v1247 = vpop.f32.mrf.mxu0
    %v1248 = vadd.f32 0.0, %v1247
    %1249 = vdwg.mxu0
    %1250 = vmatprep.subr.mxu0 0.0
    %1251 = vmatpush1.msra.mxu0 0.0
    %1252 = vmatprep.subr.mxu0 0.0
    %1253 = vmatpush1.msra.mxu0 0.0
    %1254 = vmatprep.subr.mxu0 0.0
    %1255 = vmatpush1.msra.mxu0 0.0
    %1256 = vmatprep.subr.mxu0 0.0
    %1257 = vmatpush1.msra.mxu0 0.0
    %1258 = vmatprep.subr.mxu0 0.0
    %1259 = vmatpush1.msra.mxu0 0.0
    %1260 = vmatprep.subr.mxu0 0.0
    %1261 = vmatpush1.msra.mxu0 0.0
    %1262 = vmatprep.subr.mxu0 0.0
    %1263 = vmatpush1.msra.mxu0 0.0
    %1264 = vmatprep.subr.mxu0 0.0
    %1265 = vmatpush1.msra.mxu0 0.0
    %1266 = vmatprep.subr.mxu0 0.0
    %1267 = vmatpush1.msra.mxu0 0.0
    %1268 = vmatprep.subr.mxu0 0.0
    %1269 = vmatpush1.msra.mxu0 0.0
    %1270 = vmatprep.subr.mxu0 0.0
    %1271 = vmatpush1.msra.mxu0 0.0
    %1272 = vmatprep.subr.mxu0 0.0
    %1273 = vmatpush1.msra.mxu0 0.0
    %1274 = vmatprep.subr.mxu0 0.0
    %1275 = vmatpush1.msra.mxu0 0.0
    %1276 = vmatprep.subr.mxu0 0.0
    %1277 = vmatpush1.msra.mxu0 0.0
    %1278 = vmatprep.subr.mxu0 0.0
    %1279 = vmatpush1.msra.mxu0 0.0
    %1280 = vmatprep.subr.mxu0 %v882
    %1281 = vmatpush1.msra.mxu0 %v880
    %1282 = vmatprep.subr.mxu0 0.0
    %1283 = vmatpush2.msra.mxu0 0.0
    %1284 = vmatprep.subr.mxu0 0.0
    %1285 = vmatpush2.msra.mxu0 0.0
    %1286 = vmatprep.subr.mxu0 0.0
    %1287 = vmatpush2.msra.mxu0 0.0
    %1288 = vmatprep.subr.mxu0 0.0
    %1289 = vmatpush2.msra.mxu0 0.0
    %1290 = vmatprep.subr.mxu0 0.0
    %1291 = vmatpush2.msra.mxu0 0.0
    %1292 = vmatprep.subr.mxu0 0.0
    %1293 = vmatpush2.msra.mxu0 0.0
    %1294 = vmatprep.subr.mxu0 0.0
    %1295 = vmatpush2.msra.mxu0 0.0
    %1296 = vmatprep.subr.mxu0 0.0
    %1297 = vmatpush2.msra.mxu0 0.0
    %1298 = vmatprep.subr.mxu0 0.0
    %1299 = vmatpush2.msra.mxu0 0.0
    %1300 = vmatprep.subr.mxu0 0.0
    %1301 = vmatpush2.msra.mxu0 0.0
    %1302 = vmatprep.subr.mxu0 0.0
    %1303 = vmatpush2.msra.mxu0 0.0
    %1304 = vmatprep.subr.mxu0 0.0
    %1305 = vmatpush2.msra.mxu0 0.0
    %1306 = vmatprep.subr.mxu0 0.0
    %1307 = vmatpush2.msra.mxu0 0.0
    %1308 = vmatprep.subr.mxu0 0.0
    %1309 = vmatpush2.msra.mxu0 0.0
    %1310 = vmatprep.subr.mxu0 0.0
    %1311 = vmatpush2.msra.mxu0 0.0
    %1312 = vmatprep.subr.mxu0 0.0
    %1313 = vmatpush2.msra.mxu0 0.0
    %1314 = vmatprep.mubr.f32.mxu0 0.0
    %1315 = vmatmul.mubr.f32.gmra.mxu0 %v1177
    %v1316 = vpop.f32.mrf.mxu0
    %v1317 = vadd.f32 0.0, %v1316
    %v1318 = vpop.f32.mrf.mxu0
    %v1319 = vadd.f32 0.0, %v1318
    %1320 = vdwg.mxu0
    %1321 = vmatprep.subr.mxu0 0.0
    %1322 = vmatpush1.msra.mxu0 0.0
    %1323 = vmatprep.subr.mxu0 0.0
    %1324 = vmatpush1.msra.mxu0 0.0
    %1325 = vmatprep.subr.mxu0 0.0
    %1326 = vmatpush1.msra.mxu0 0.0
    %1327 = vmatprep.subr.mxu0 0.0
    %1328 = vmatpush1.msra.mxu0 0.0
    %1329 = vmatprep.subr.mxu0 0.0
    %1330 = vmatpush1.msra.mxu0 0.0
    %1331 = vmatprep.subr.mxu0 0.0
    %1332 = vmatpush1.msra.mxu0 0.0
    %1333 = vmatprep.subr.mxu0 0.0
    %1334 = vmatpush1.msra.mxu0 0.0
    %1335 = vmatprep.subr.mxu0 0.0
    %1336 = vmatpush1.msra.mxu0 0.0
    %1337 = vmatprep.subr.mxu0 0.0
    %1338 = vmatpush1.msra.mxu0 0.0
    %1339 = vmatprep.subr.mxu0 0.0
    %1340 = vmatpush1.msra.mxu0 0.0
    %1341 = vmatprep.subr.mxu0 0.0
    %1342 = vmatpush1.msra.mxu0 0.0
    %1343 = vmatprep.subr.mxu0 0.0
    %1344 = vmatpush1.msra.mxu0 0.0
    %1345 = vmatprep.subr.mxu0 0.0
    %1346 = vmatpush1.msra.mxu0 0.0
    %1347 = vmatprep.subr.mxu0 0.0
    %1348 = vmatpush1.msra.mxu0 0.0
    %1349 = vmatprep.subr.mxu0 0.0
    %1350 = vmatpush1.msra.mxu0 0.0
    %1351 = vmatprep.subr.mxu0 %v886
    %1352 = vmatpush1.msra.mxu0 %v884
    %1353 = vmatprep.subr.mxu0 0.0
    %1354 = vmatpush2.msra.mxu0 0.0
    %1355 = vmatprep.subr.mxu0 0.0
    %1356 = vmatpush2.msra.mxu0 0.0
    %1357 = vmatprep.subr.mxu0 0.0
    %1358 = vmatpush2.msra.mxu0 0.0
    %1359 = vmatprep.subr.mxu0 0.0
    %1360 = vmatpush2.msra.mxu0 0.0
    %1361 = vmatprep.subr.mxu0 0.0
    %1362 = vmatpush2.msra.mxu0 0.0
    %1363 = vmatprep.subr.mxu0 0.0
    %1364 = vmatpush2.msra.mxu0 0.0
    %1365 = vmatprep.subr.mxu0 0.0
    %1366 = vmatpush2.msra.mxu0 0.0
    %1367 = vmatprep.subr.mxu0 0.0
    %1368 = vmatpush2.msra.mxu0 0.0
    %1369 = vmatprep.subr.mxu0 0.0
    %1370 = vmatpush2.msra.mxu0 0.0
    %1371 = vmatprep.subr.mxu0 0.0
    %1372 = vmatpush2.msra.mxu0 0.0
    %1373 = vmatprep.subr.mxu0 0.0
    %1374 = vmatpush2.msra.mxu0 0.0
    %1375 = vmatprep.subr.mxu0 0.0
    %1376 = vmatpush2.msra.mxu0 0.0
    %1377 = vmatprep.subr.mxu0 0.0
    %1378 = vmatpush2.msra.mxu0 0.0
    %1379 = vmatprep.subr.mxu0 0.0
    %1380 = vmatpush2.msra.mxu0 0.0
    %1381 = vmatprep.subr.mxu0 0.0
    %1382 = vmatpush2.msra.mxu0 0.0
    %1383 = vmatprep.subr.mxu0 0.0
    %1384 = vmatpush2.msra.mxu0 0.0
    %1385 = vmatprep.mubr.f32.mxu0 0.0
    %1386 = vmatmul.mubr.f32.gmra.mxu0 %v1177
    %v1387 = vpop.f32.mrf.mxu0
    %v1388 = vadd.f32 0.0, %v1387
    %v1389 = vpop.f32.mrf.mxu0
    %v1390 = vadd.f32 0.0, %v1389
    %1391 = vdwg.mxu0
    %1392 = vmatprep.subr.mxu0 0.0
    %1393 = vmatpush1.msra.mxu0 0.0
    %1394 = vmatprep.subr.mxu0 0.0
    %1395 = vmatpush1.msra.mxu0 0.0
    %1396 = vmatprep.subr.mxu0 0.0
    %1397 = vmatpush1.msra.mxu0 0.0
    %1398 = vmatprep.subr.mxu0 0.0
    %1399 = vmatpush1.msra.mxu0 0.0
    %1400 = vmatprep.subr.mxu0 0.0
    %1401 = vmatpush1.msra.mxu0 0.0
    %1402 = vmatprep.subr.mxu0 0.0
    %1403 = vmatpush1.msra.mxu0 0.0
    %1404 = vmatprep.subr.mxu0 0.0
    %1405 = vmatpush1.msra.mxu0 0.0
    %1406 = vmatprep.subr.mxu0 0.0
    %1407 = vmatpush1.msra.mxu0 0.0
    %1408 = vmatprep.subr.mxu0 0.0
    %1409 = vmatpush1.msra.mxu0 0.0
    %1410 = vmatprep.subr.mxu0 0.0
    %1411 = vmatpush1.msra.mxu0 0.0
    %1412 = vmatprep.subr.mxu0 0.0
    %1413 = vmatpush1.msra.mxu0 0.0
    %1414 = vmatprep.subr.mxu0 0.0
    %1415 = vmatpush1.msra.mxu0 0.0
    %1416 = vmatprep.subr.mxu0 0.0
    %1417 = vmatpush1.msra.mxu0 0.0
    %1418 = vmatprep.subr.mxu0 0.0
    %1419 = vmatpush1.msra.mxu0 0.0
    %1420 = vmatprep.subr.mxu0 0.0
    %1421 = vmatpush1.msra.mxu0 0.0
    %1422 = vmatprep.subr.mxu0 %v890
    %1423 = vmatpush1.msra.mxu0 %v888
    %1424 = vmatprep.subr.mxu0 0.0
    %1425 = vmatpush2.msra.mxu0 0.0
    %1426 = vmatprep.subr.mxu0 0.0
    %1427 = vmatpush2.msra.mxu0 0.0
    %1428 = vmatprep.subr.mxu0 0.0
    %1429 = vmatpush2.msra.mxu0 0.0
    %1430 = vmatprep.subr.mxu0 0.0
    %1431 = vmatpush2.msra.mxu0 0.0
    %1432 = vmatprep.subr.mxu0 0.0
    %1433 = vmatpush2.msra.mxu0 0.0
    %1434 = vmatprep.subr.mxu0 0.0
    %1435 = vmatpush2.msra.mxu0 0.0
    %1436 = vmatprep.subr.mxu0 0.0
    %1437 = vmatpush2.msra.mxu0 0.0
    %1438 = vmatprep.subr.mxu0 0.0
    %1439 = vmatpush2.msra.mxu0 0.0
    %1440 = vmatprep.subr.mxu0 0.0
    %1441 = vmatpush2.msra.mxu0 0.0
    %1442 = vmatprep.subr.mxu0 0.0
    %1443 = vmatpush2.msra.mxu0 0.0
    %1444 = vmatprep.subr.mxu0 0.0
    %1445 = vmatpush2.msra.mxu0 0.0
    %1446 = vmatprep.subr.mxu0 0.0
    %1447 = vmatpush2.msra.mxu0 0.0
    %1448 = vmatprep.subr.mxu0 0.0
    %1449 = vmatpush2.msra.mxu0 0.0
    %1450 = vmatprep.subr.mxu0 0.0
    %1451 = vmatpush2.msra.mxu0 0.0
    %1452 = vmatprep.subr.mxu0 0.0
    %1453 = vmatpush2.msra.mxu0 0.0
    %1454 = vmatprep.subr.mxu0 0.0
    %1455 = vmatpush2.msra.mxu0 0.0
    %1456 = vmatprep.mubr.f32.mxu0 0.0
    %1457 = vmatmul.mubr.f32.gmra.mxu0 %v1177
    %v1458 = vpop.f32.mrf.mxu0
    %v1459 = vadd.f32 0.0, %v1458
    %v1460 = vpop.f32.mrf.mxu0
    %v1461 = vadd.f32 0.0, %v1460
    %1462 = vdwg.mxu0
    %v1463 = vlaneseq
    %v1464 = vshrl.u32 %v1463, 7
    %v1465 = vsub.s32 0, %v1464
    %v1466 = vrot.slane %v959, %v1465
    %v1467 = vlaneseq
    %v1468 = vshrl.u32 %v1467, 7
    %v1469 = vsub.s32 0, %v1468
    %v1470 = vrot.slane %v961, %v1469
    %v1471 = vlaneseq
    %v1472 = vshrl.u32 %v1471, 7
    %v1473 = vsub.s32 0, %v1472
    %v1474 = vrot.slane %v1030, %v1473
    %v1475 = vlaneseq
    %v1476 = vshrl.u32 %v1475, 7
    %v1477 = vsub.s32 0, %v1476
    %v1478 = vrot.slane %v1032, %v1477
    %v1479 = vlaneseq
    %v1480 = vshrl.u32 %v1479, 7
    %v1481 = vsub.s32 0, %v1480
    %v1482 = vrot.slane %v1101, %v1481
    %v1483 = vlaneseq
    %v1484 = vshrl.u32 %v1483, 7
    %v1485 = vsub.s32 0, %v1484
    %v1486 = vrot.slane %v1103, %v1485
    %v1487 = vlaneseq
    %v1488 = vshrl.u32 %v1487, 7
    %v1489 = vsub.s32 0, %v1488
    %v1490 = vrot.slane %v1172, %v1489
    %v1491 = vlaneseq
    %v1492 = vshrl.u32 %v1491, 7
    %v1493 = vsub.s32 0, %v1492
    %v1494 = vrot.slane %v1174, %v1493
    %v1495 = vmul.f32 %v47, %v1466
    %v1496 = vmul.f32 %v48, %v1470
    %v1497 = vmul.f32 %v49, %v1474
    %v1498 = vmul.f32 %v50, %v1478
    %v1499 = vmul.f32 %v51, %v1482
    %v1500 = vmul.f32 %v52, %v1486
    %v1501 = vmul.f32 %v53, %v1490
    %v1502 = vmul.f32 %v54, %v1494
    %v1503 = vlaneseq
    %v1504 = vshrl.u32 %v1503, 7
    %v1505 = vsub.s32 0, %v1504
    %v1506 = vrot.slane %v1246, %v1505
    %v1507 = vlaneseq
    %v1508 = vshrl.u32 %v1507, 7
    %v1509 = vsub.s32 0, %v1508
    %v1510 = vrot.slane %v1248, %v1509
    %v1511 = vlaneseq
    %v1512 = vshrl.u32 %v1511, 7
    %v1513 = vsub.s32 0, %v1512
    %v1514 = vrot.slane %v1317, %v1513
    %v1515 = vlaneseq
    %v1516 = vshrl.u32 %v1515, 7
    %v1517 = vsub.s32 0, %v1516
    %v1518 = vrot.slane %v1319, %v1517
    %v1519 = vlaneseq
    %v1520 = vshrl.u32 %v1519, 7
    %v1521 = vsub.s32 0, %v1520
    %v1522 = vrot.slane %v1388, %v1521
    %v1523 = vlaneseq
    %v1524 = vshrl.u32 %v1523, 7
    %v1525 = vsub.s32 0, %v1524
    %v1526 = vrot.slane %v1390, %v1525
    %v1527 = vlaneseq
    %v1528 = vshrl.u32 %v1527, 7
    %v1529 = vsub.s32 0, %v1528
    %v1530 = vrot.slane %v1459, %v1529
    %v1531 = vlaneseq
    %v1532 = vshrl.u32 %v1531, 7
    %v1533 = vsub.s32 0, %v1532
    %v1534 = vrot.slane %v1461, %v1533
    %v1535 = vadd.f32 %v1495, %v1506
    %v1536 = vadd.f32 %v1496, %v1510
    %v1537 = vadd.f32 %v1497, %v1514
    %v1538 = vadd.f32 %v1498, %v1518
    %v1539 = vadd.f32 %v1499, %v1522
    %v1540 = vadd.f32 %v1500, %v1526
    %v1541 = vadd.f32 %v1501, %v1530
    %v1542 = vadd.f32 %v1502, %v1534
    %v1543 = vld [vmem:[%s5] sm:$0xff]
    %v1544 = vld [vmem:[%s5 + $0x8] sm:$0xff]
    %v1545 = vld [vmem:[%s5 + $0x10] sm:$0xff]
    %v1546 = vld [vmem:[%s5 + $0x18] sm:$0xff]
    %v1547 = vld [vmem:[%s5 + $0x20] sm:$0xff]
    %v1548 = vld [vmem:[%s5 + $0x28] sm:$0xff]
    %v1549 = vld [vmem:[%s5 + $0x30] sm:$0xff]
    %v1550 = vld [vmem:[%s5 + $0x38] sm:$0xff]
    %v1551 = vld [vmem:[%s5 + $0x40] sm:$0xff]
    %v1552 = vld [vmem:[%s5 + $0x48] sm:$0xff]
    %v1553 = vld [vmem:[%s5 + $0x50] sm:$0xff]
    %v1554 = vld [vmem:[%s5 + $0x58] sm:$0xff]
    %v1555 = vld [vmem:[%s5 + $0x60] sm:$0xff]
    %v1556 = vld [vmem:[%s5 + $0x68] sm:$0xff]
    %v1557 = vld [vmem:[%s5 + $0x70] sm:$0xff]
    %v1558 = vld [vmem:[%s5 + $0x78] sm:$0xff]
    %v1559 = vld [vmem:[%s5 + $0x80] sm:$0xff]
    %v1560 = vld [vmem:[%s5 + $0x88] sm:$0xff]
    %v1561 = vld [vmem:[%s5 + $0x90] sm:$0xff]
    %v1562 = vld [vmem:[%s5 + $0x98] sm:$0xff]
    %v1563 = vld [vmem:[%s5 + $0xa0] sm:$0xff]
    %v1564 = vld [vmem:[%s5 + $0xa8] sm:$0xff]
    %v1565 = vld [vmem:[%s5 + $0xb0] sm:$0xff]
    %v1566 = vld [vmem:[%s5 + $0xb8] sm:$0xff]
    %v1567 = vld [vmem:[%s5 + $0xc0] sm:$0xff]
    %v1568 = vld [vmem:[%s5 + $0xc8] sm:$0xff]
    %v1569 = vld [vmem:[%s5 + $0xd0] sm:$0xff]
    %v1570 = vld [vmem:[%s5 + $0xd8] sm:$0xff]
    %v1571 = vld [vmem:[%s5 + $0xe0] sm:$0xff]
    %v1572 = vld [vmem:[%s5 + $0xe8] sm:$0xff]
    %v1573 = vld [vmem:[%s5 + $0xf0] sm:$0xff]
    %v1574 = vld [vmem:[%s5 + $0xf8] sm:$0xff]
    %v1575 = vld [vmem:[%s5 + $0x100] sm:$0xff]
    %v1576 = vld [vmem:[%s5 + $0x108] sm:$0xff]
    %v1577 = vld [vmem:[%s5 + $0x110] sm:$0xff]
    %v1578 = vld [vmem:[%s5 + $0x118] sm:$0xff]
    %v1579 = vld [vmem:[%s5 + $0x120] sm:$0xff]
    %v1580 = vld [vmem:[%s5 + $0x128] sm:$0xff]
    %v1581 = vld [vmem:[%s5 + $0x130] sm:$0xff]
    %v1582 = vld [vmem:[%s5 + $0x138] sm:$0xff]
    %v1583 = vld [vmem:[%s5 + $0x140] sm:$0xff]
    %v1584 = vld [vmem:[%s5 + $0x148] sm:$0xff]
    %v1585 = vld [vmem:[%s5 + $0x150] sm:$0xff]
    %v1586 = vld [vmem:[%s5 + $0x158] sm:$0xff]
    %v1587 = vld [vmem:[%s5 + $0x160] sm:$0xff]
    %v1588 = vld [vmem:[%s5 + $0x168] sm:$0xff]
    %v1589 = vld [vmem:[%s5 + $0x170] sm:$0xff]
    %v1590 = vld [vmem:[%s5 + $0x178] sm:$0xff]
    %v1591 = vld [vmem:[%s5 + $0x180] sm:$0xff]
    %v1592 = vld [vmem:[%s5 + $0x188] sm:$0xff]
    %v1593 = vld [vmem:[%s5 + $0x190] sm:$0xff]
    %v1594 = vld [vmem:[%s5 + $0x198] sm:$0xff]
    %v1595 = vld [vmem:[%s5 + $0x1a0] sm:$0xff]
    %v1596 = vld [vmem:[%s5 + $0x1a8] sm:$0xff]
    %v1597 = vld [vmem:[%s5 + $0x1b0] sm:$0xff]
    %v1598 = vld [vmem:[%s5 + $0x1b8] sm:$0xff]
    %v1599 = vld [vmem:[%s5 + $0x1c0] sm:$0xff]
    %v1600 = vld [vmem:[%s5 + $0x1c8] sm:$0xff]
    %v1601 = vld [vmem:[%s5 + $0x1d0] sm:$0xff]
    %v1602 = vld [vmem:[%s5 + $0x1d8] sm:$0xff]
    %v1603 = vld [vmem:[%s5 + $0x1e0] sm:$0xff]
    %v1604 = vld [vmem:[%s5 + $0x1e8] sm:$0xff]
    %v1605 = vld [vmem:[%s5 + $0x1f0] sm:$0xff]
    %v1606 = vld [vmem:[%s5 + $0x1f8] sm:$0xff]
    %v1607 = vld [vmem:[%s5 + $0x200] sm:$0xff]
    %v1608 = vld [vmem:[%s5 + $0x208] sm:$0xff]
    %v1609 = vld [vmem:[%s5 + $0x210] sm:$0xff]
    %v1610 = vld [vmem:[%s5 + $0x218] sm:$0xff]
    %v1611 = vld [vmem:[%s5 + $0x220] sm:$0xff]
    %v1612 = vld [vmem:[%s5 + $0x228] sm:$0xff]
    %v1613 = vld [vmem:[%s5 + $0x230] sm:$0xff]
    %v1614 = vld [vmem:[%s5 + $0x238] sm:$0xff]
    %v1615 = vld [vmem:[%s5 + $0x240] sm:$0xff]
    %v1616 = vld [vmem:[%s5 + $0x248] sm:$0xff]
    %v1617 = vld [vmem:[%s5 + $0x250] sm:$0xff]
    %v1618 = vld [vmem:[%s5 + $0x258] sm:$0xff]
    %v1619 = vld [vmem:[%s5 + $0x260] sm:$0xff]
    %v1620 = vld [vmem:[%s5 + $0x268] sm:$0xff]
    %v1621 = vld [vmem:[%s5 + $0x270] sm:$0xff]
    %v1622 = vld [vmem:[%s5 + $0x278] sm:$0xff]
    %v1623 = vld [vmem:[%s5 + $0x280] sm:$0xff]
    %v1624 = vld [vmem:[%s5 + $0x288] sm:$0xff]
    %v1625 = vld [vmem:[%s5 + $0x290] sm:$0xff]
    %v1626 = vld [vmem:[%s5 + $0x298] sm:$0xff]
    %v1627 = vld [vmem:[%s5 + $0x2a0] sm:$0xff]
    %v1628 = vld [vmem:[%s5 + $0x2a8] sm:$0xff]
    %v1629 = vld [vmem:[%s5 + $0x2b0] sm:$0xff]
    %v1630 = vld [vmem:[%s5 + $0x2b8] sm:$0xff]
    %v1631 = vld [vmem:[%s5 + $0x2c0] sm:$0xff]
    %v1632 = vld [vmem:[%s5 + $0x2c8] sm:$0xff]
    %v1633 = vld [vmem:[%s5 + $0x2d0] sm:$0xff]
    %v1634 = vld [vmem:[%s5 + $0x2d8] sm:$0xff]
    %v1635 = vld [vmem:[%s5 + $0x2e0] sm:$0xff]
    %v1636 = vld [vmem:[%s5 + $0x2e8] sm:$0xff]
    %v1637 = vld [vmem:[%s5 + $0x2f0] sm:$0xff]
    %v1638 = vld [vmem:[%s5 + $0x2f8] sm:$0xff]
    %v1639 = vld [vmem:[%s5 + $0x300] sm:$0xff]
    %v1640 = vld [vmem:[%s5 + $0x308] sm:$0xff]
    %v1641 = vld [vmem:[%s5 + $0x310] sm:$0xff]
    %v1642 = vld [vmem:[%s5 + $0x318] sm:$0xff]
    %v1643 = vld [vmem:[%s5 + $0x320] sm:$0xff]
    %v1644 = vld [vmem:[%s5 + $0x328] sm:$0xff]
    %v1645 = vld [vmem:[%s5 + $0x330] sm:$0xff]
    %v1646 = vld [vmem:[%s5 + $0x338] sm:$0xff]
    %v1647 = vld [vmem:[%s5 + $0x340] sm:$0xff]
    %v1648 = vld [vmem:[%s5 + $0x348] sm:$0xff]
    %v1649 = vld [vmem:[%s5 + $0x350] sm:$0xff]
    %v1650 = vld [vmem:[%s5 + $0x358] sm:$0xff]
    %v1651 = vld [vmem:[%s5 + $0x360] sm:$0xff]
    %v1652 = vld [vmem:[%s5 + $0x368] sm:$0xff]
    %v1653 = vld [vmem:[%s5 + $0x370] sm:$0xff]
    %v1654 = vld [vmem:[%s5 + $0x378] sm:$0xff]
    %v1655 = vld [vmem:[%s5 + $0x380] sm:$0xff]
    %v1656 = vld [vmem:[%s5 + $0x388] sm:$0xff]
    %v1657 = vld [vmem:[%s5 + $0x390] sm:$0xff]
    %v1658 = vld [vmem:[%s5 + $0x398] sm:$0xff]
    %v1659 = vld [vmem:[%s5 + $0x3a0] sm:$0xff]
    %v1660 = vld [vmem:[%s5 + $0x3a8] sm:$0xff]
    %v1661 = vld [vmem:[%s5 + $0x3b0] sm:$0xff]
    %v1662 = vld [vmem:[%s5 + $0x3b8] sm:$0xff]
    %v1663 = vld [vmem:[%s5 + $0x3c0] sm:$0xff]
    %v1664 = vld [vmem:[%s5 + $0x3c8] sm:$0xff]
    %v1665 = vld [vmem:[%s5 + $0x3d0] sm:$0xff]
    %v1666 = vld [vmem:[%s5 + $0x3d8] sm:$0xff]
    %v1667 = vld [vmem:[%s5 + $0x3e0] sm:$0xff]
    %v1668 = vld [vmem:[%s5 + $0x3e8] sm:$0xff]
    %v1669 = vld [vmem:[%s5 + $0x3f0] sm:$0xff]
    %v1670 = vld [vmem:[%s5 + $0x3f8] sm:$0xff]
    %v1671 = vld [vmem:[%s6] sm:$0x1]
    %v1673 = vlaneseq
    %v1674 = vshrl.u32 %v1673, 7
    %v1675 = vsub.s32 0, %v1674
    %v1676 = vrot.slane %v1671, %v1675
    %1678 = vmatprep.subr.mxu0 0.0
    %1679 = vmatpush1.msra.mxu0 %v1558
    %1680 = vmatprep.subr.mxu0 0.0
    %1681 = vmatpush1.msra.mxu0 %v1557
    %1682 = vmatprep.subr.mxu0 0.0
    %1683 = vmatpush1.msra.mxu0 %v1556
    %1684 = vmatprep.subr.mxu0 0.0
    %1685 = vmatpush1.msra.mxu0 %v1555
    %1686 = vmatprep.subr.mxu0 0.0
    %1687 = vmatpush1.msra.mxu0 %v1554
    %1688 = vmatprep.subr.mxu0 0.0
    %1689 = vmatpush1.msra.mxu0 %v1553
    %1690 = vmatprep.subr.mxu0 0.0
    %1691 = vmatpush1.msra.mxu0 %v1552
    %1692 = vmatprep.subr.mxu0 0.0
    %1693 = vmatpush1.msra.mxu0 %v1551
    %1694 = vmatprep.subr.mxu0 0.0
    %1695 = vmatpush1.msra.mxu0 %v1550
    %1696 = vmatprep.subr.mxu0 0.0
    %1697 = vmatpush1.msra.mxu0 %v1549
    %1698 = vmatprep.subr.mxu0 0.0
    %1699 = vmatpush1.msra.mxu0 %v1548
    %1700 = vmatprep.subr.mxu0 0.0
    %1701 = vmatpush1.msra.mxu0 %v1547
    %1702 = vmatprep.subr.mxu0 0.0
    %1703 = vmatpush1.msra.mxu0 %v1546
    %1704 = vmatprep.subr.mxu0 0.0
    %1705 = vmatpush1.msra.mxu0 %v1545
    %1706 = vmatprep.subr.mxu0 0.0
    %1707 = vmatpush1.msra.mxu0 %v1544
    %1708 = vmatprep.subr.mxu0 0.0
    %1709 = vmatpush1.msra.mxu0 %v1543
    %1710 = vmatprep.subr.mxu0 0.0
    %1711 = vmatpush2.msra.mxu0 %v1574
    %1712 = vmatprep.subr.mxu0 0.0
    %1713 = vmatpush2.msra.mxu0 %v1573
    %1714 = vmatprep.subr.mxu0 0.0
    %1715 = vmatpush2.msra.mxu0 %v1572
    %1716 = vmatprep.subr.mxu0 0.0
    %1717 = vmatpush2.msra.mxu0 %v1571
    %1718 = vmatprep.subr.mxu0 0.0
    %1719 = vmatpush2.msra.mxu0 %v1570
    %1720 = vmatprep.subr.mxu0 0.0
    %1721 = vmatpush2.msra.mxu0 %v1569
    %1722 = vmatprep.subr.mxu0 0.0
    %1723 = vmatpush2.msra.mxu0 %v1568
    %1724 = vmatprep.subr.mxu0 0.0
    %1725 = vmatpush2.msra.mxu0 %v1567
    %1726 = vmatprep.subr.mxu0 0.0
    %1727 = vmatpush2.msra.mxu0 %v1566
    %1728 = vmatprep.subr.mxu0 0.0
    %1729 = vmatpush2.msra.mxu0 %v1565
    %1730 = vmatprep.subr.mxu0 0.0
    %1731 = vmatpush2.msra.mxu0 %v1564
    %1732 = vmatprep.subr.mxu0 0.0
    %1733 = vmatpush2.msra.mxu0 %v1563
    %1734 = vmatprep.subr.mxu0 0.0
    %1735 = vmatpush2.msra.mxu0 %v1562
    %1736 = vmatprep.subr.mxu0 0.0
    %1737 = vmatpush2.msra.mxu0 %v1561
    %1738 = vmatprep.subr.mxu0 0.0
    %1739 = vmatpush2.msra.mxu0 %v1560
    %1740 = vmatprep.subr.mxu0 0.0
    %1741 = vmatpush2.msra.mxu0 %v1559
    %1742 = vmatprep.mubr.f32.mxu0 %v1536
    %1743 = vmatmul.mubr.f32.gmra.mxu0 %v1535
    %v1744 = vpop.f32.mrf.mxu0
    %v1745 = vadd.f32 %v1676, %v1744
    %v1746 = vpop.f32.mrf.mxu0
    %1747 = vdwg.mxu0
    %1748 = vmatprep.subr.mxu0 0.0
    %1749 = vmatpush1.msra.mxu0 %v1590
    %1750 = vmatprep.subr.mxu0 0.0
    %1751 = vmatpush1.msra.mxu0 %v1589
    %1752 = vmatprep.subr.mxu0 0.0
    %1753 = vmatpush1.msra.mxu0 %v1588
    %1754 = vmatprep.subr.mxu0 0.0
    %1755 = vmatpush1.msra.mxu0 %v1587
    %1756 = vmatprep.subr.mxu0 0.0
    %1757 = vmatpush1.msra.mxu0 %v1586
    %1758 = vmatprep.subr.mxu0 0.0
    %1759 = vmatpush1.msra.mxu0 %v1585
    %1760 = vmatprep.subr.mxu0 0.0
    %1761 = vmatpush1.msra.mxu0 %v1584
    %1762 = vmatprep.subr.mxu0 0.0
    %1763 = vmatpush1.msra.mxu0 %v1583
    %1764 = vmatprep.subr.mxu0 0.0
    %1765 = vmatpush1.msra.mxu0 %v1582
    %1766 = vmatprep.subr.mxu0 0.0
    %1767 = vmatpush1.msra.mxu0 %v1581
    %1768 = vmatprep.subr.mxu0 0.0
    %1769 = vmatpush1.msra.mxu0 %v1580
    %1770 = vmatprep.subr.mxu0 0.0
    %1771 = vmatpush1.msra.mxu0 %v1579
    %1772 = vmatprep.subr.mxu0 0.0
    %1773 = vmatpush1.msra.mxu0 %v1578
    %1774 = vmatprep.subr.mxu0 0.0
    %1775 = vmatpush1.msra.mxu0 %v1577
    %1776 = vmatprep.subr.mxu0 0.0
    %1777 = vmatpush1.msra.mxu0 %v1576
    %1778 = vmatprep.subr.mxu0 0.0
    %1779 = vmatpush1.msra.mxu0 %v1575
    %1780 = vmatprep.subr.mxu0 0.0
    %1781 = vmatpush2.msra.mxu0 %v1606
    %1782 = vmatprep.subr.mxu0 0.0
    %1783 = vmatpush2.msra.mxu0 %v1605
    %1784 = vmatprep.subr.mxu0 0.0
    %1785 = vmatpush2.msra.mxu0 %v1604
    %1786 = vmatprep.subr.mxu0 0.0
    %1787 = vmatpush2.msra.mxu0 %v1603
    %1788 = vmatprep.subr.mxu0 0.0
    %1789 = vmatpush2.msra.mxu0 %v1602
    %1790 = vmatprep.subr.mxu0 0.0
    %1791 = vmatpush2.msra.mxu0 %v1601
    %1792 = vmatprep.subr.mxu0 0.0
    %1793 = vmatpush2.msra.mxu0 %v1600
    %1794 = vmatprep.subr.mxu0 0.0
    %1795 = vmatpush2.msra.mxu0 %v1599
    %1796 = vmatprep.subr.mxu0 0.0
    %1797 = vmatpush2.msra.mxu0 %v1598
    %1798 = vmatprep.subr.mxu0 0.0
    %1799 = vmatpush2.msra.mxu0 %v1597
    %1800 = vmatprep.subr.mxu0 0.0
    %1801 = vmatpush2.msra.mxu0 %v1596
    %1802 = vmatprep.subr.mxu0 0.0
    %1803 = vmatpush2.msra.mxu0 %v1595
    %1804 = vmatprep.subr.mxu0 0.0
    %1805 = vmatpush2.msra.mxu0 %v1594
    %1806 = vmatprep.subr.mxu0 0.0
    %1807 = vmatpush2.msra.mxu0 %v1593
    %1808 = vmatprep.subr.mxu0 0.0
    %1809 = vmatpush2.msra.mxu0 %v1592
    %1810 = vmatprep.subr.mxu0 0.0
    %1811 = vmatpush2.msra.mxu0 %v1591
    %1812 = vmatprep.mubr.f32.mxu0 %v1538
    %1813 = vmatmul.mubr.f32.gmra.mxu0 %v1537
    %v1814 = vpop.f32.mrf.mxu0
    %v1815 = vadd.f32 %v1745, %v1814
    %v1816 = vpop.f32.mrf.mxu0
    %1817 = vdwg.mxu0
    %1818 = vmatprep.subr.mxu0 0.0
    %1819 = vmatpush1.msra.mxu0 %v1622
    %1820 = vmatprep.subr.mxu0 0.0
    %1821 = vmatpush1.msra.mxu0 %v1621
    %1822 = vmatprep.subr.mxu0 0.0
    %1823 = vmatpush1.msra.mxu0 %v1620
    %1824 = vmatprep.subr.mxu0 0.0
    %1825 = vmatpush1.msra.mxu0 %v1619
    %1826 = vmatprep.subr.mxu0 0.0
    %1827 = vmatpush1.msra.mxu0 %v1618
    %1828 = vmatprep.subr.mxu0 0.0
    %1829 = vmatpush1.msra.mxu0 %v1617
    %1830 = vmatprep.subr.mxu0 0.0
    %1831 = vmatpush1.msra.mxu0 %v1616
    %1832 = vmatprep.subr.mxu0 0.0
    %1833 = vmatpush1.msra.mxu0 %v1615
    %1834 = vmatprep.subr.mxu0 0.0
    %1835 = vmatpush1.msra.mxu0 %v1614
    %1836 = vmatprep.subr.mxu0 0.0
    %1837 = vmatpush1.msra.mxu0 %v1613
    %1838 = vmatprep.subr.mxu0 0.0
    %1839 = vmatpush1.msra.mxu0 %v1612
    %1840 = vmatprep.subr.mxu0 0.0
    %1841 = vmatpush1.msra.mxu0 %v1611
    %1842 = vmatprep.subr.mxu0 0.0
    %1843 = vmatpush1.msra.mxu0 %v1610
    %1844 = vmatprep.subr.mxu0 0.0
    %1845 = vmatpush1.msra.mxu0 %v1609
    %1846 = vmatprep.subr.mxu0 0.0
    %1847 = vmatpush1.msra.mxu0 %v1608
    %1848 = vmatprep.subr.mxu0 0.0
    %1849 = vmatpush1.msra.mxu0 %v1607
    %1850 = vmatprep.subr.mxu0 0.0
    %1851 = vmatpush2.msra.mxu0 %v1638
    %1852 = vmatprep.subr.mxu0 0.0
    %1853 = vmatpush2.msra.mxu0 %v1637
    %1854 = vmatprep.subr.mxu0 0.0
    %1855 = vmatpush2.msra.mxu0 %v1636
    %1856 = vmatprep.subr.mxu0 0.0
    %1857 = vmatpush2.msra.mxu0 %v1635
    %1858 = vmatprep.subr.mxu0 0.0
    %1859 = vmatpush2.msra.mxu0 %v1634
    %1860 = vmatprep.subr.mxu0 0.0
    %1861 = vmatpush2.msra.mxu0 %v1633
    %1862 = vmatprep.subr.mxu0 0.0
    %1863 = vmatpush2.msra.mxu0 %v1632
    %1864 = vmatprep.subr.mxu0 0.0
    %1865 = vmatpush2.msra.mxu0 %v1631
    %1866 = vmatprep.subr.mxu0 0.0
    %1867 = vmatpush2.msra.mxu0 %v1630
    %1868 = vmatprep.subr.mxu0 0.0
    %1869 = vmatpush2.msra.mxu0 %v1629
    %1870 = vmatprep.subr.mxu0 0.0
    %1871 = vmatpush2.msra.mxu0 %v1628
    %1872 = vmatprep.subr.mxu0 0.0
    %1873 = vmatpush2.msra.mxu0 %v1627
    %1874 = vmatprep.subr.mxu0 0.0
    %1875 = vmatpush2.msra.mxu0 %v1626
    %1876 = vmatprep.subr.mxu0 0.0
    %1877 = vmatpush2.msra.mxu0 %v1625
    %1878 = vmatprep.subr.mxu0 0.0
    %1879 = vmatpush2.msra.mxu0 %v1624
    %1880 = vmatprep.subr.mxu0 0.0
    %1881 = vmatpush2.msra.mxu0 %v1623
    %1882 = vmatprep.mubr.f32.mxu0 %v1540
    %1883 = vmatmul.mubr.f32.gmra.mxu0 %v1539
    %v1884 = vpop.f32.mrf.mxu0
    %v1885 = vadd.f32 %v1815, %v1884
    %v1886 = vpop.f32.mrf.mxu0
    %1887 = vdwg.mxu0
    %1888 = vmatprep.subr.mxu0 0.0
    %1889 = vmatpush1.msra.mxu0 %v1654
    %1890 = vmatprep.subr.mxu0 0.0
    %1891 = vmatpush1.msra.mxu0 %v1653
    %1892 = vmatprep.subr.mxu0 0.0
    %1893 = vmatpush1.msra.mxu0 %v1652
    %1894 = vmatprep.subr.mxu0 0.0
    %1895 = vmatpush1.msra.mxu0 %v1651
    %1896 = vmatprep.subr.mxu0 0.0
    %1897 = vmatpush1.msra.mxu0 %v1650
    %1898 = vmatprep.subr.mxu0 0.0
    %1899 = vmatpush1.msra.mxu0 %v1649
    %1900 = vmatprep.subr.mxu0 0.0
    %1901 = vmatpush1.msra.mxu0 %v1648
    %1902 = vmatprep.subr.mxu0 0.0
    %1903 = vmatpush1.msra.mxu0 %v1647
    %1904 = vmatprep.subr.mxu0 0.0
    %1905 = vmatpush1.msra.mxu0 %v1646
    %1906 = vmatprep.subr.mxu0 0.0
    %1907 = vmatpush1.msra.mxu0 %v1645
    %1908 = vmatprep.subr.mxu0 0.0
    %1909 = vmatpush1.msra.mxu0 %v1644
    %1910 = vmatprep.subr.mxu0 0.0
    %1911 = vmatpush1.msra.mxu0 %v1643
    %1912 = vmatprep.subr.mxu0 0.0
    %1913 = vmatpush1.msra.mxu0 %v1642
    %1914 = vmatprep.subr.mxu0 0.0
    %1915 = vmatpush1.msra.mxu0 %v1641
    %1916 = vmatprep.subr.mxu0 0.0
    %1917 = vmatpush1.msra.mxu0 %v1640
    %1918 = vmatprep.subr.mxu0 0.0
    %1919 = vmatpush1.msra.mxu0 %v1639
    %1920 = vmatprep.subr.mxu0 0.0
    %1921 = vmatpush2.msra.mxu0 %v1670
    %1922 = vmatprep.subr.mxu0 0.0
    %1923 = vmatpush2.msra.mxu0 %v1669
    %1924 = vmatprep.subr.mxu0 0.0
    %1925 = vmatpush2.msra.mxu0 %v1668
    %1926 = vmatprep.subr.mxu0 0.0
    %1927 = vmatpush2.msra.mxu0 %v1667
    %1928 = vmatprep.subr.mxu0 0.0
    %1929 = vmatpush2.msra.mxu0 %v1666
    %1930 = vmatprep.subr.mxu0 0.0
    %1931 = vmatpush2.msra.mxu0 %v1665
    %1932 = vmatprep.subr.mxu0 0.0
    %1933 = vmatpush2.msra.mxu0 %v1664
    %1934 = vmatprep.subr.mxu0 0.0
    %1935 = vmatpush2.msra.mxu0 %v1663
    %1936 = vmatprep.subr.mxu0 0.0
    %1937 = vmatpush2.msra.mxu0 %v1662
    %1938 = vmatprep.subr.mxu0 0.0
    %1939 = vmatpush2.msra.mxu0 %v1661
    %1940 = vmatprep.subr.mxu0 0.0
    %1941 = vmatpush2.msra.mxu0 %v1660
    %1942 = vmatprep.subr.mxu0 0.0
    %1943 = vmatpush2.msra.mxu0 %v1659
    %1944 = vmatprep.subr.mxu0 0.0
    %1945 = vmatpush2.msra.mxu0 %v1658
    %1946 = vmatprep.subr.mxu0 0.0
    %1947 = vmatpush2.msra.mxu0 %v1657
    %1948 = vmatprep.subr.mxu0 0.0
    %1949 = vmatpush2.msra.mxu0 %v1656
    %1950 = vmatprep.subr.mxu0 0.0
    %1951 = vmatpush2.msra.mxu0 %v1655
    %1952 = vmatprep.mubr.f32.mxu0 %v1542
    %1953 = vmatmul.mubr.f32.gmra.mxu0 %v1541
    %v1954 = vpop.f32.mrf.mxu0
    %v1955 = vadd.f32 %v1885, %v1954
    %v1956 = vpop.f32.mrf.mxu0
    %1957 = vdwg.mxu0
    %1958 = vmax.xlane.f32.xlu0 %v1955
    %v1959 = vpop.xlane.xlu0 %1958
    %v1960 = vsub.f32 %v1955, %v1959
    %v1961 = vmul.f32 %v1960, 1.442695
    %v1962 = vpow.pop %v1961
    %1963 = vadd.xlane.f32.xlu0 %v1962
    %v1964 = vpop.xlane.xlu0 %1963
    %v1965 = vrcp.pop %v1964
    %v1966 = vmul.f32 %v1962, %v1965
    %1967 = vst [vmem:[#allocation5] sm:$0xff] %v1966
    // Predicated region
    $region34: #{tpu_custom_call.1} parent=1 // pred_check
      _
    $region35: #{tpu_custom_call.1} parent=1 // pred_check_branch
      %1969 = sbr.rel (0) target = $region37
    $region36: #{tpu_custom_call.1} parent=1 // pred_region
      %s1971 = ssub.s32 128, 128
      %1972 = vsyncadd [#allocation4], %s1971
      %s1974 = sshll.u32 [#allocation5], 4
      %s1975 = int_to_ptr.vmem [resolvable:$true] %s1974
      %1977 = dma.vmem_to_hbm [thread:$0]  %s1975, 128, %s7, [#allocation4]
    $region37: #{tpu_custom_call.1} parent=1 // pred_fallthru
      _
    // Predicated region
    $region38: #{tpu_custom_call.1} parent=1 // pred_check
      _
    $region39: #{tpu_custom_call.1} parent=1 // pred_check_branch
      %1979 = sbr.rel (0) target = $region41
    $region40: #{tpu_custom_call.1} parent=1 // pred_region
      %1980 = dma.done [#allocation4], 128
    $region41: #{tpu_custom_call.1} parent=1 // pred_fallthru
      _
    %1981 = vsyncpa [#allocation3], 1
    %1982 = vsyncpa [#allocation4], 1

</llo_original>
